<compile_context>
chip_gen: v5e
topology: v5e:2x2
jax: 0.10.0
libtpu: 0.0.40
codegen_flags: <defaults>
</compile_context>

<pallas_src>
import functools

import jax
import jax.numpy as jnp
import numpy as np
from jax.experimental import pallas as pl
from jax.experimental.pallas import tpu as pltpu


# (shift, phase) -> (ky, kx) kernel tap for the 3x3 / stride-2 / pad-1 / outpad-1
# transposed conv.  Shifts: 0=center, 1=right, 2=down, 3=down-right.
# Output sub-pixel phases: p = 2*dy + dx.
_PHASE_TAPS = {
    (0, 0): (1, 1),
    (0, 1): (1, 2), (1, 1): (1, 0),
    (0, 2): (2, 1), (2, 2): (0, 1),
    (0, 3): (2, 2), (1, 3): (2, 0), (2, 3): (0, 2), (3, 3): (0, 0),
}


def _round_up(a, m):
    return (a + m - 1) // m * m


# -----------------------------------------------------------------------------
# Pallas kernels
# -----------------------------------------------------------------------------
def _shifted_phase_matmuls(x_ref, w_ref, p_valid, w_stride, cin):
    """sum_s x[rows + off_s] @ W_s with W_s = w_ref[s*cin:(s+1)*cin].

    x_ref holds one zero-padded image flattened to (P_pad, cin) rows; the row
    offsets 0 / 1 / (W+1) / (W+2) select the centre / right / down / down-right
    neighbours directly from the VMEM block.  Returns (p_valid, 4*Cout) f32.
    """
    acc = None
    for s, off in enumerate((0, 1, w_stride, w_stride + 1)):
        xs = x_ref[pl.ds(off, p_valid), :]
        ws = w_ref[pl.ds(s * cin, cin), :]
        t = jnp.dot(xs, ws, preferred_element_type=jnp.float32)
        acc = t if acc is None else acc + t
    return acc


def deconv_kernel(x_ref, w_ref, b_ref, o_ref, *, p_valid, w_stride, cin):
    # x_ref: (P_pad, Cin)   w_ref: (4*Cin, 4*Cout)   b_ref: (1, 4*Cout)
    # o_ref: (P, 4*Cout)  -- all 4 sub-pixel phases of one image, lane-dense.
    o_ref[...] = (_shifted_phase_matmuls(x_ref, w_ref, p_valid, w_stride, cin)
                  + b_ref[...])


def deconv_skip_kernel(x_ref, s_ref, w_ref, ws_ref, b_ref, o_ref, *,
                       p_valid, w_stride, cin):
    # deconv_kernel plus a fused 1x1-conv skip merge on the output:
    #   s_ref: (P, 4*Cs) phase-packed skip, ws_ref: (4*Cs, 4*Cout) block-diagonal.
    acc = _shifted_phase_matmuls(x_ref, w_ref, p_valid, w_stride, cin)
    acc = acc + jnp.dot(s_ref[...], ws_ref[...], preferred_element_type=jnp.float32)
    o_ref[...] = acc + b_ref[...]


# -----------------------------------------------------------------------------
# Weight packing / layout helpers (plain JAX, runs once under jit)
# -----------------------------------------------------------------------------
def _pack_shift_weight(tap_fn, cin, cout):
    """Block weight (4*cin, 4*cout): rows grouped by shift, cols by output phase."""
    zeros = jnp.zeros((cin, cout), jnp.float32)
    rows = []
    for s in range(4):
        blocks = [tap_fn(*_PHASE_TAPS[(s, p)]) if (s, p) in _PHASE_TAPS else zeros
                  for p in range(4)]
        rows.append(jnp.concatenate(blocks, axis=1))
    return jnp.concatenate(rows, axis=0)


def _pad_flatten(x_nhwc, p_pad):
    """(N,H,W,C) -> (N, p_pad, C): zero-pad one row/col, flatten, zero tail rows."""
    n, h, w, c = x_nhwc.shape
    xp = jnp.pad(x_nhwc, ((0, 0), (0, 1), (0, 1), (0, 0)))
    xf = xp.reshape(n, (h + 1) * (w + 1), c)
    return jnp.pad(xf, ((0, 0), (0, p_pad - (h + 1) * (w + 1)), (0, 0)))


def _phase_pack(skip_nhwc):
    """(N, 2H, 2W, C) -> (N, (H+1)*(W+1), 4*C): 2x2 phases into channels, with the
    same padded-row layout as the fused deconv output."""
    n, h2, w2, c = skip_nhwc.shape
    h, w = h2 // 2, w2 // 2
    s = (skip_nhwc.reshape(n, h, 2, w, 2, c)
         .transpose(0, 1, 3, 2, 4, 5).reshape(n, h, w, 4 * c))
    s = jnp.pad(s, ((0, 0), (0, 1), (0, 1), (0, 0)))
    return s.reshape(n, (h + 1) * (w + 1), 4 * c)


# -----------------------------------------------------------------------------
# pallas_call wrapper: one fused transposed-conv stage
# -----------------------------------------------------------------------------
def fused_deconv_stage(x_nhwc, w_big, b_packed, cout,
                       skip_phases=None, ws_blkdiag=None):
    """ConvTranspose2d(3,stride=2,padding=1,output_padding=1) on NHWC, optionally
    with a fused 1x1-conv skip merge added to the output.  -> (N, 2H, 2W, cout)."""
    n, h, w, cin = x_nhwc.shape
    p = (h + 1) * (w + 1)                    # rows per image incl. boundary pad
    p_pad = _round_up(p + w + 2, 8)          # tail so shifted loads stay in-bounds
    xf = _pad_flatten(x_nhwc.astype(jnp.float32), p_pad)          # (N, p_pad, cin)
    b2 = b_packed.reshape(1, 4 * cout).astype(jnp.float32)
    w_big = w_big.astype(jnp.float32)
    # TODO(synk): optional bf16 cast of activations/weights (f32 accumulation)
    # would halve HBM traffic on v6e/v5e; kept f32 to match the f32 reference.

    x_spec = pl.BlockSpec((None, p_pad, cin), lambda i: (i, 0, 0))
    o_spec = pl.BlockSpec((None, p, 4 * cout), lambda i: (i, 0, 0))
    w_spec = pl.BlockSpec((4 * cin, 4 * cout), lambda i: (0, 0))
    b_spec = pl.BlockSpec((1, 4 * cout), lambda i: (0, 0))

    if skip_phases is None:
        kern = functools.partial(deconv_kernel, p_valid=p, w_stride=w + 1, cin=cin)
        in_specs = [x_spec, w_spec, b_spec]
        args = (xf, w_big, b2)
    else:
        cs = skip_phases.shape[-1]
        kern = functools.partial(deconv_skip_kernel, p_valid=p, w_stride=w + 1,
                                 cin=cin)
        in_specs = [x_spec,
                    pl.BlockSpec((None, p, cs), lambda i: (i, 0, 0)),
                    w_spec,
                    pl.BlockSpec((cs, 4 * cout), lambda i: (0, 0)),
                    b_spec]
        args = (xf, skip_phases.astype(jnp.float32), w_big,
                ws_blkdiag.astype(jnp.float32), b2)

    out = pl.pallas_call(
        kern,
        out_shape=jax.ShapeDtypeStruct((n, p, 4 * cout), jnp.float32),
        grid_spec=pltpu.PrefetchScalarGridSpec(
            num_scalar_prefetch=0,
            grid=(n,),
            in_specs=in_specs,
            out_specs=o_spec),
        compiler_params=pltpu.CompilerParams(dimension_semantics=("parallel",)),
    )(*args)

    # strip boundary-pad rows and interleave the 4 sub-pixel phases
    out = out.reshape(n, h + 1, w + 1, 2, 2, cout)[:, :h, :w]
    return out.transpose(0, 1, 3, 2, 4, 5).reshape(n, 2 * h, 2 * w, cout)


# -----------------------------------------------------------------------------
# Full module forward
# -----------------------------------------------------------------------------
def upsampling_forward(x_nchw, low_nchw, outsize, params):
    """Forward pass of the instantiated Upsampling module (NCHW in/out)."""
    to_nhwc = lambda a: jnp.transpose(a, (0, 2, 3, 1))
    x = to_nhwc(x_nchw).astype(jnp.float32)
    skip0 = to_nhwc(low_nchw[1]).astype(jnp.float32)   # merged at layer 0
    skip2 = to_nhwc(low_nchw[0]).astype(jnp.float32)   # merged after last layer
    n, h, w, _ = x.shape

    # ---- stage 0: (x + Conv1x1(skip0)) -> ConvTranspose2d(16,16,...) ----
    # The 1x1 merge is folded into the deconv weights; the appended ones-channel
    # carries the merge bias so it is zero at the padded image border.
    ct0 = params['ct0_w'].astype(jnp.float32)          # (3,3,16,16)
    mc0_w = params['mc0_w'].astype(jnp.float32)        # (12,16)
    mc0_b = params['mc0_b'].astype(jnp.float32)        # (16,)

    ones = jnp.ones((n, h, w, 1), jnp.float32)
    z0 = jnp.concatenate([x, skip0, ones], axis=-1)    # (N,H,W,29)
    cin0 = 16 + mc0_w.shape[0] + 1

    def tap0(ky, kx):
        wt = ct0[ky, kx]                               # (16,16)
        return jnp.concatenate([wt, mc0_w @ wt, (mc0_b @ wt)[None, :]], axis=0)

    w0_big = _pack_shift_weight(tap0, cin0, 16)        # (116, 64)
    b0_pack = jnp.tile(params['ct0_b'].astype(jnp.float32), 4)
    x = fused_deconv_stage(z0, w0_big, b0_pack, cout=16)          # (N,2H,2W,16)

    # ---- stage 1: ConvTranspose2d(16,8,...)(x, output_size=outsize)
    #               + Conv1x1(skip2), fused into one kernel ----
    # TODO(synk): arbitrary output_size values that change output_padding are not
    # supported; outsize must equal the default 2x upsample (asserted below).
    ct1 = params['ct1_w'].astype(jnp.float32)          # (3,3,16,8)
    mc2_w = params['mc2_w'].astype(jnp.float32)        # (6,8)
    w1_big = _pack_shift_weight(lambda ky, kx: ct1[ky, kx], 16, 8)   # (64, 32)
    ws_blk = jnp.kron(jnp.eye(4, dtype=jnp.float32), mc2_w)          # (24, 32)
    b1_pack = jnp.tile(params['ct1_b'].astype(jnp.float32)
                       + params['mc2_b'].astype(jnp.float32), 4)
    skip_phases = _phase_pack(skip2)                   # (N, (2H+1)*(2W+1), 24)
    x = fused_deconv_stage(x, w1_big, b1_pack, cout=8,
                           skip_phases=skip_phases, ws_blkdiag=ws_blk)  # (N,4H,4W,8)
    assert (x.shape[1], x.shape[2]) == tuple(outsize)

    return jnp.transpose(x, (0, 3, 1, 2))              # back to NCHW


# -----------------------------------------------------------------------------
# Pure-JAX reference (independent zero-insertion formulation)
# -----------------------------------------------------------------------------
def conv1x1_ref(skip_nhwc, w, b):
    return jnp.einsum('nhwc,cd->nhwd', skip_nhwc, w) + b


def deconv_ref(x_nhwc, w, b):
    N, H, W, Cin = x_nhwc.shape
    Cout = w.shape[-1]
    xdil = jnp.zeros((N, 2 * H - 1, 2 * W - 1, Cin), x_nhwc.dtype)
    xdil = xdil.at[:, ::2, ::2, :].set(x_nhwc)
    xp = jnp.pad(xdil, ((0, 0), (1, 2), (1, 2), (0, 0)))   # k-1-p left, +out_pad right
    out = jnp.zeros((N, 2 * H, 2 * W, Cout), jnp.float32) + b
    for ky in range(3):
        for kx in range(3):
            wf = w[2 - ky, 2 - kx]                          # flipped kernel
            out = out + jnp.einsum('nhwc,cd->nhwd',
                                   xp[:, ky:ky + 2 * H, kx:kx + 2 * W, :], wf)
    return out


# -----------------------------------------------------------------------------
if __name__ == "__main__":
    key = jax.random.PRNGKey(0)
    keys = jax.random.split(key, 12)

    N, H, W = 2, 8, 8
    outsize = (4 * H, 4 * W)

    # PyTorch-layout (NCHW) inputs
    x_nchw = jax.random.normal(keys[0], (N, 16, H, W), jnp.float32)
    low0_nchw = jax.random.normal(keys[1], (N, 6, 4 * H, 4 * W), jnp.float32)
    low1_nchw = jax.random.normal(keys[2], (N, 12, H, W), jnp.float32)

    s = 0.1
    params = dict(
        mc0_w=jax.random.normal(keys[3], (12, 16), jnp.float32) * s,   # Conv2d(12,16,1)
        mc0_b=jax.random.normal(keys[4], (16,), jnp.float32) * s,
        ct0_w=jax.random.normal(keys[5], (3, 3, 16, 16), jnp.float32) * s,  # CT(16,16)
        ct0_b=jax.random.normal(keys[6], (16,), jnp.float32) * s,
        ct1_w=jax.random.normal(keys[7], (3, 3, 16, 8), jnp.float32) * s,   # CT(16,8)
        ct1_b=jax.random.normal(keys[8], (8,), jnp.float32) * s,
        mc2_w=jax.random.normal(keys[9], (6, 8), jnp.float32) * s,      # Conv2d(6,8,1)
        mc2_b=jax.random.normal(keys[10], (8,), jnp.float32) * s,
    )

    fwd = jax.jit(lambda x, l0, l1: upsampling_forward(x, [l0, l1], outsize, params))
    out = jax.block_until_ready(fwd(x_nchw, low0_nchw, low1_nchw))
    assert out.shape == (N, 8, 4 * H, 4 * W), out.shape

    # reference check (NHWC)
    to_nhwc = lambda a: jnp.transpose(a, (0, 2, 3, 1))
    xr = to_nhwc(x_nchw) + conv1x1_ref(to_nhwc(low1_nchw), params['mc0_w'], params['mc0_b'])
    xr = deconv_ref(xr, params['ct0_w'], params['ct0_b'])
    xr = deconv_ref(xr, params['ct1_w'], params['ct1_b'])
    xr = conv1x1_ref(to_nhwc(low0_nchw), params['mc2_w'], params['mc2_b']) + xr

    np.testing.assert_allclose(np.asarray(jnp.transpose(out, (0, 2, 3, 1))),
                               np.asarray(xr), rtol=1e-4, atol=1e-4)
    print("KERNEL_OK")
</pallas_src>

<mosaic_0001>
module attributes {stable_mosaic.version = 11 : i64} {
  func.func @deconv_kernel(%arg0: i32, %arg1: memref<1x96x29xf32, #tpu.memory_space<vmem>>, %arg2: memref<116x64xf32, #tpu.memory_space<vmem>>, %arg3: memref<1x64xf32, #tpu.memory_space<vmem>>, %arg4: memref<1x81x64xf32, #tpu.memory_space<vmem>>) attributes {dimension_semantics = [#tpu.dimension_semantics<parallel>], iteration_bounds = array<i64: 2>, scalar_prefetch = 0 : i64, scratch_operands = 0 : i64, tpu.core_type = #tpu.core_type<tc>, window_params = [{transform_indices = @transform_0, window_bounds = array<i64: 1, 96, 29>}, {pipeline_mode = #tpu.pipeline_mode<synchronous>, transform_indices = @transform_1, window_bounds = array<i64: 116, 64>}, {pipeline_mode = #tpu.pipeline_mode<synchronous>, transform_indices = @transform_2, window_bounds = array<i64: 1, 64>}, {transform_indices = @transform_3, window_bounds = array<i64: 1, 81, 64>}]} {
    %c0 = arith.constant 0 : index
    %c0_0 = arith.constant 0 : index
    %c0_1 = arith.constant 0 : index
    %0 = vector.load %arg1[%c0, %c0_0, %c0_1] : memref<1x96x29xf32, #tpu.memory_space<vmem>>, vector<1x81x29xf32>
    %1 = vector.shape_cast %0 : vector<1x81x29xf32> to vector<81x29xf32>
    %c0_2 = arith.constant 0 : index
    %c0_3 = arith.constant 0 : index
    %2 = vector.load %arg2[%c0_2, %c0_3] : memref<116x64xf32, #tpu.memory_space<vmem>>, vector<29x64xf32>
    %cst = arith.constant dense<0.000000e+00> : vector<81x64xf32>
    %3 = tpu.matmul %1, %2, %cst {dimension_numbers = #tpu.dot_dimension_numbers<[1], [0], [0], [1], [0, 0, 1, 1], [], []>} : vector<81x29xf32>, vector<29x64xf32>, vector<81x64xf32> -> vector<81x64xf32>
    %c0_4 = arith.constant 0 : index
    %c1 = arith.constant 1 : index
    %c0_5 = arith.constant 0 : index
    %4 = vector.load %arg1[%c0_4, %c1, %c0_5] : memref<1x96x29xf32, #tpu.memory_space<vmem>>, vector<1x81x29xf32>
    %5 = vector.shape_cast %4 : vector<1x81x29xf32> to vector<81x29xf32>
    %c29 = arith.constant 29 : index
    %c0_6 = arith.constant 0 : index
    %6 = vector.load %arg2[%c29, %c0_6] : memref<116x64xf32, #tpu.memory_space<vmem>>, vector<29x64xf32>
    %cst_7 = arith.constant dense<0.000000e+00> : vector<81x64xf32>
    %7 = tpu.matmul %5, %6, %cst_7 {dimension_numbers = #tpu.dot_dimension_numbers<[1], [0], [0], [1], [0, 0, 1, 1], [], []>} : vector<81x29xf32>, vector<29x64xf32>, vector<81x64xf32> -> vector<81x64xf32>
    %8 = arith.addf %3, %7 : vector<81x64xf32>
    %c0_8 = arith.constant 0 : index
    %c9 = arith.constant 9 : index
    %c0_9 = arith.constant 0 : index
    %9 = vector.load %arg1[%c0_8, %c9, %c0_9] : memref<1x96x29xf32, #tpu.memory_space<vmem>>, vector<1x81x29xf32>
    %10 = vector.shape_cast %9 : vector<1x81x29xf32> to vector<81x29xf32>
    %c58 = arith.constant 58 : index
    %c0_10 = arith.constant 0 : index
    %11 = vector.load %arg2[%c58, %c0_10] : memref<116x64xf32, #tpu.memory_space<vmem>>, vector<29x64xf32>
    %cst_11 = arith.constant dense<0.000000e+00> : vector<81x64xf32>
    %12 = tpu.matmul %10, %11, %cst_11 {dimension_numbers = #tpu.dot_dimension_numbers<[1], [0], [0], [1], [0, 0, 1, 1], [], []>} : vector<81x29xf32>, vector<29x64xf32>, vector<81x64xf32> -> vector<81x64xf32>
    %13 = arith.addf %8, %12 : vector<81x64xf32>
    %c0_12 = arith.constant 0 : index
    %c10 = arith.constant 10 : index
    %c0_13 = arith.constant 0 : index
    %14 = vector.load %arg1[%c0_12, %c10, %c0_13] : memref<1x96x29xf32, #tpu.memory_space<vmem>>, vector<1x81x29xf32>
    %15 = vector.shape_cast %14 : vector<1x81x29xf32> to vector<81x29xf32>
    %c87 = arith.constant 87 : index
    %c0_14 = arith.constant 0 : index
    %16 = vector.load %arg2[%c87, %c0_14] : memref<116x64xf32, #tpu.memory_space<vmem>>, vector<29x64xf32>
    %cst_15 = arith.constant dense<0.000000e+00> : vector<81x64xf32>
    %17 = tpu.matmul %15, %16, %cst_15 {dimension_numbers = #tpu.dot_dimension_numbers<[1], [0], [0], [1], [0, 0, 1, 1], [], []>} : vector<81x29xf32>, vector<29x64xf32>, vector<81x64xf32> -> vector<81x64xf32>
    %18 = arith.addf %13, %17 : vector<81x64xf32>
    %c0_16 = arith.constant 0 : index
    %c0_17 = arith.constant 0 : index
    %19 = vector.load %arg3[%c0_16, %c0_17] : memref<1x64xf32, #tpu.memory_space<vmem>>, vector<1x64xf32>
    %20 = vector.broadcast %19 : vector<1x64xf32> to vector<81x64xf32>
    %21 = arith.addf %18, %20 : vector<81x64xf32>
    %c0_18 = arith.constant 0 : index
    %c0_19 = arith.constant 0 : index
    %c0_20 = arith.constant 0 : index
    %22 = vector.load %arg4[%c0_18, %c0_19, %c0_20] : memref<1x81x64xf32, #tpu.memory_space<vmem>>, vector<1x81x64xf32>
    %23 = vector.shape_cast %22 : vector<1x81x64xf32> to vector<81x64xf32>
    %24 = vector.shape_cast %21 : vector<81x64xf32> to vector<1x81x64xf32>
    tpu.vector_store %arg4[%c0_18, %c0_19, %c0_20], %24 {strides = array<i32>} : memref<1x81x64xf32, #tpu.memory_space<vmem>>, vector<1x81x64xf32>,
    return
  }
  func.func @transform_0(%arg0: i32) -> (i32, i32, i32) {
    %c0_i32 = arith.constant 0 : i32
    %c0_i32_0 = arith.constant 0 : i32
    %c0_i32_1 = arith.constant 0 : i32
    return %arg0, %c0_i32, %c0_i32_0 : i32, i32, i32
  }
  func.func @transform_1(%arg0: i32) -> (i32, i32) {
    %c0_i32 = arith.constant 0 : i32
    %c0_i32_0 = arith.constant 0 : i32
    %c0_i32_1 = arith.constant 0 : i32
    return %c0_i32, %c0_i32_0 : i32, i32
  }
  func.func @transform_2(%arg0: i32) -> (i32, i32) {
    %c0_i32 = arith.constant 0 : i32
    %c0_i32_0 = arith.constant 0 : i32
    %c0_i32_1 = arith.constant 0 : i32
    return %c0_i32, %c0_i32_0 : i32, i32
  }
  func.func @transform_3(%arg0: i32) -> (i32, i32, i32) {
    %c0_i32 = arith.constant 0 : i32
    %c0_i32_0 = arith.constant 0 : i32
    %c0_i32_1 = arith.constant 0 : i32
    return %arg0, %c0_i32, %c0_i32_0 : i32, i32, i32
  }
}

module attributes {stable_mosaic.version = 11 : i64} {
  func.func @deconv_skip_kernel(%arg0: i32, %arg1: memref<1x312x16xf32, #tpu.memory_space<vmem>>, %arg2: memref<1x289x24xf32, #tpu.memory_space<vmem>>, %arg3: memref<64x32xf32, #tpu.memory_space<vmem>>, %arg4: memref<24x32xf32, #tpu.memory_space<vmem>>, %arg5: memref<1x32xf32, #tpu.memory_space<vmem>>, %arg6: memref<1x289x32xf32, #tpu.memory_space<vmem>>) attributes {dimension_semantics = [#tpu.dimension_semantics<parallel>], iteration_bounds = array<i64: 2>, scalar_prefetch = 0 : i64, scratch_operands = 0 : i64, tpu.core_type = #tpu.core_type<tc>, window_params = [{transform_indices = @transform_0, window_bounds = array<i64: 1, 312, 16>}, {transform_indices = @transform_1, window_bounds = array<i64: 1, 289, 24>}, {pipeline_mode = #tpu.pipeline_mode<synchronous>, transform_indices = @transform_2, window_bounds = array<i64: 64, 32>}, {pipeline_mode = #tpu.pipeline_mode<synchronous>, transform_indices = @transform_3, window_bounds = array<i64: 24, 32>}, {pipeline_mode = #tpu.pipeline_mode<synchronous>, transform_indices = @transform_4, window_bounds = array<i64: 1, 32>}, {transform_indices = @transform_5, window_bounds = array<i64: 1, 289, 32>}]} {
    %c0 = arith.constant 0 : index
    %c0_0 = arith.constant 0 : index
    %c0_1 = arith.constant 0 : index
    %0 = vector.load %arg1[%c0, %c0_0, %c0_1] : memref<1x312x16xf32, #tpu.memory_space<vmem>>, vector<1x289x16xf32>
    %1 = vector.shape_cast %0 : vector<1x289x16xf32> to vector<289x16xf32>
    %c0_2 = arith.constant 0 : index
    %c0_3 = arith.constant 0 : index
    %2 = vector.load %arg3[%c0_2, %c0_3] : memref<64x32xf32, #tpu.memory_space<vmem>>, vector<16x32xf32>
    %cst = arith.constant dense<0.000000e+00> : vector<289x32xf32>
    %3 = tpu.matmul %1, %2, %cst {dimension_numbers = #tpu.dot_dimension_numbers<[1], [0], [0], [1], [0, 0, 1, 1], [], []>} : vector<289x16xf32>, vector<16x32xf32>, vector<289x32xf32> -> vector<289x32xf32>
    %c0_4 = arith.constant 0 : index
    %c1 = arith.constant 1 : index
    %c0_5 = arith.constant 0 : index
    %4 = vector.load %arg1[%c0_4, %c1, %c0_5] : memref<1x312x16xf32, #tpu.memory_space<vmem>>, vector<1x289x16xf32>
    %5 = vector.shape_cast %4 : vector<1x289x16xf32> to vector<289x16xf32>
    %c16 = arith.constant 16 : index
    %c0_6 = arith.constant 0 : index
    %6 = vector.load %arg3[%c16, %c0_6] : memref<64x32xf32, #tpu.memory_space<vmem>>, vector<16x32xf32>
    %cst_7 = arith.constant dense<0.000000e+00> : vector<289x32xf32>
    %7 = tpu.matmul %5, %6, %cst_7 {dimension_numbers = #tpu.dot_dimension_numbers<[1], [0], [0], [1], [0, 0, 1, 1], [], []>} : vector<289x16xf32>, vector<16x32xf32>, vector<289x32xf32> -> vector<289x32xf32>
    %8 = arith.addf %3, %7 : vector<289x32xf32>
    %c0_8 = arith.constant 0 : index
    %c17 = arith.constant 17 : index
    %c0_9 = arith.constant 0 : index
    %9 = vector.load %arg1[%c0_8, %c17, %c0_9] : memref<1x312x16xf32, #tpu.memory_space<vmem>>, vector<1x289x16xf32>
    %10 = vector.shape_cast %9 : vector<1x289x16xf32> to vector<289x16xf32>
    %c32 = arith.constant 32 : index
    %c0_10 = arith.constant 0 : index
    %11 = vector.load %arg3[%c32, %c0_10] : memref<64x32xf32, #tpu.memory_space<vmem>>, vector<16x32xf32>
    %cst_11 = arith.constant dense<0.000000e+00> : vector<289x32xf32>
    %12 = tpu.matmul %10, %11, %cst_11 {dimension_numbers = #tpu.dot_dimension_numbers<[1], [0], [0], [1], [0, 0, 1, 1], [], []>} : vector<289x16xf32>, vector<16x32xf32>, vector<289x32xf32> -> vector<289x32xf32>
    %13 = arith.addf %8, %12 : vector<289x32xf32>
    %c0_12 = arith.constant 0 : index
    %c18 = arith.constant 18 : index
    %c0_13 = arith.constant 0 : index
    %14 = vector.load %arg1[%c0_12, %c18, %c0_13] : memref<1x312x16xf32, #tpu.memory_space<vmem>>, vector<1x289x16xf32>
    %15 = vector.shape_cast %14 : vector<1x289x16xf32> to vector<289x16xf32>
    %c48 = arith.constant 48 : index
    %c0_14 = arith.constant 0 : index
    %16 = vector.load %arg3[%c48, %c0_14] : memref<64x32xf32, #tpu.memory_space<vmem>>, vector<16x32xf32>
    %cst_15 = arith.constant dense<0.000000e+00> : vector<289x32xf32>
    %17 = tpu.matmul %15, %16, %cst_15 {dimension_numbers = #tpu.dot_dimension_numbers<[1], [0], [0], [1], [0, 0, 1, 1], [], []>} : vector<289x16xf32>, vector<16x32xf32>, vector<289x32xf32> -> vector<289x32xf32>
    %18 = arith.addf %13, %17 : vector<289x32xf32>
    %c0_16 = arith.constant 0 : index
    %c0_17 = arith.constant 0 : index
    %c0_18 = arith.constant 0 : index
    %19 = vector.load %arg2[%c0_16, %c0_17, %c0_18] : memref<1x289x24xf32, #tpu.memory_space<vmem>>, vector<1x289x24xf32>
    %20 = vector.shape_cast %19 : vector<1x289x24xf32> to vector<289x24xf32>
    %c0_19 = arith.constant 0 : index
    %c0_20 = arith.constant 0 : index
    %21 = vector.load %arg4[%c0_19, %c0_20] : memref<24x32xf32, #tpu.memory_space<vmem>>, vector<24x32xf32>
    %cst_21 = arith.constant dense<0.000000e+00> : vector<289x32xf32>
    %22 = tpu.matmul %20, %21, %cst_21 {dimension_numbers = #tpu.dot_dimension_numbers<[1], [0], [0], [1], [0, 0, 1, 1], [], []>} : vector<289x24xf32>, vector<24x32xf32>, vector<289x32xf32> -> vector<289x32xf32>
    %23 = arith.addf %18, %22 : vector<289x32xf32>
    %c0_22 = arith.constant 0 : index
    %c0_23 = arith.constant 0 : index
    %24 = vector.load %arg5[%c0_22, %c0_23] : memref<1x32xf32, #tpu.memory_space<vmem>>, vector<1x32xf32>
    %25 = vector.broadcast %24 : vector<1x32xf32> to vector<289x32xf32>
    %26 = arith.addf %23, %25 : vector<289x32xf32>
    %c0_24 = arith.constant 0 : index
    %c0_25 = arith.constant 0 : index
    %c0_26 = arith.constant 0 : index
    %27 = vector.load %arg6[%c0_24, %c0_25, %c0_26] : memref<1x289x32xf32, #tpu.memory_space<vmem>>, vector<1x289x32xf32>
    %28 = vector.shape_cast %27 : vector<1x289x32xf32> to vector<289x32xf32>
    %29 = vector.shape_cast %26 : vector<289x32xf32> to vector<1x289x32xf32>
    tpu.vector_store %arg6[%c0_24, %c0_25, %c0_26], %29 {strides = array<i32>} : memref<1x289x32xf32, #tpu.memory_space<vmem>>, vector<1x289x32xf32>,
    return
  }
  func.func @transform_0(%arg0: i32) -> (i32, i32, i32) {
    %c0_i32 = arith.constant 0 : i32
    %c0_i32_0 = arith.constant 0 : i32
    %c0_i32_1 = arith.constant 0 : i32
    return %arg0, %c0_i32, %c0_i32_0 : i32, i32, i32
  }
  func.func @transform_1(%arg0: i32) -> (i32, i32, i32) {
    %c0_i32 = arith.constant 0 : i32
    %c0_i32_0 = arith.constant 0 : i32
    %c0_i32_1 = arith.constant 0 : i32
    return %arg0, %c0_i32, %c0_i32_0 : i32, i32, i32
  }
  func.func @transform_2(%arg0: i32) -> (i32, i32) {
    %c0_i32 = arith.constant 0 : i32
    %c0_i32_0 = arith.constant 0 : i32
    %c0_i32_1 = arith.constant 0 : i32
    return %c0_i32, %c0_i32_0 : i32, i32
  }
  func.func @transform_3(%arg0: i32) -> (i32, i32) {
    %c0_i32 = arith.constant 0 : i32
    %c0_i32_0 = arith.constant 0 : i32
    %c0_i32_1 = arith.constant 0 : i32
    return %c0_i32, %c0_i32_0 : i32, i32
  }
  func.func @transform_4(%arg0: i32) -> (i32, i32) {
    %c0_i32 = arith.constant 0 : i32
    %c0_i32_0 = arith.constant 0 : i32
    %c0_i32_1 = arith.constant 0 : i32
    return %c0_i32, %c0_i32_0 : i32, i32
  }
  func.func @transform_5(%arg0: i32) -> (i32, i32, i32) {
    %c0_i32 = arith.constant 0 : i32
    %c0_i32_0 = arith.constant 0 : i32
    %c0_i32_1 = arith.constant 0 : i32
    return %arg0, %c0_i32, %c0_i32_0 : i32, i32, i32
  }
}

</mosaic_0001>

<llo_original>
// kernel: tile.10
$region0: #{tile.10}
  #allocation0 [shape = 's32[1]{0}', space=sflag, size = 0x4, scoped, tag = 'scoped memory for tile.10']
  %s0 = inlined_call_operand.vmem [shape: f32[16], index: 0, kind: input, shape index: {}]
  %s1 = inlined_call_operand.vmem [shape: f32[4,16], index: 1, kind: output, shape index: {}]
  // Predicated region
  $region2: #{tile.10} parent=0 // pred_check
    _
  $region3: #{tile.10} parent=0 // pred_check_branch
    %3 = sbr.rel (0) target = $region5
  $region4: #{tile.10} parent=0 // pred_region
    _
  $region5: #{tile.10} parent=0 // pred_fallthru
    _
  %v4 = vld [vmem:[%s0] ss:$0 sm:$0xff]
  %5 = vst [vmem:[%s1] sm:$0xf] %v4

// kernel: tile.11
$region0: #{tile.11}
  %s0 = inlined_call_operand.vmem [shape: f32[4,16], index: 0, kind: input, shape index: {}]
  %s1 = inlined_call_operand.vmem [shape: f32[1,64], index: 1, kind: output, shape index: {}]
  $region1: #{tile.11} parent=0
    #allocation0 [shape = 'u8[4096]{0}', space=vmem, size = 0x1000, scoped, tag = 'scoped mem for output reshape']
    #allocation1 [shape = 'u8[4096]{0}', space=vmem, size = 0x1000, scoped, tag = 'scoped mem for input reshape']
    %s3 = ssub.s32 16, 1
    %v4 = vld [vmem:[%s0] sm:%s3]
    %5 = vst [vmem:[#allocation1] sm:%s3] %v4
    %v6 = vld [vmem:[#allocation1] sm:$0x1]
    %vm7 = vcmask 130048
    %8 = vst.msk [vmem:[#allocation0] sm:$0x1] %vm7, %v6
    %s9 = scalar_lea.vmem [#allocation1], 3
    %v10 = vld [vmem:[%s9] sm:$0x1]
    %11 = vrot.lane.b32.xlu0 %v10, 48
    %v12 = vpop.permute.xlu0 %11
    %vm13 = vcmask 523648
    %14 = vst.msk [vmem:[#allocation0] sm:$0x1] %vm13, %v12
    %s15 = scalar_lea.vmem [#allocation1], 2
    %v16 = vld [vmem:[%s15] sm:$0x1]
    %17 = vrot.lane.b32.xlu0 %v16, 32
    %v18 = vpop.permute.xlu0 %17
    %vm19 = vcmask 392448
    %20 = vst.msk [vmem:[#allocation0] sm:$0x1] %vm19, %v18
    %s21 = scalar_lea.vmem [#allocation1], 1
    %v22 = vld [vmem:[%s21] sm:$0x1]
    %23 = vrot.lane.b32.xlu0 %v22, 16
    %v24 = vpop.permute.xlu0 %23
    %vm25 = vcmask 261248
    %26 = vst.msk [vmem:[#allocation0] sm:$0x1] %vm25, %v24
    %s28 = ssub.s32 2, 1
    %v29 = vld [vmem:[#allocation0] sm:%s28]
    %s31 = ssub.s32 2, 1
    %32 = vst [vmem:[%s1] sm:%s31] %v29

// kernel: _lambda_.2
$region0: #{_lambda_.2}
  #allocation0 [shape = 'u32[]', space=smem, size = 0x4, offset = 0x4, fixed_abs, tag = 'smem constant byte address 0x4 - core index']
  #allocation1 [shape = 'u32[72,128]{1,0:T(1,128)}', space=vmem, size = 0x9000, scoped, tag = 'internal scratch']
  %s0 = inlined_call_operand.vmem [shape: f32[2,96,29], index: 0, kind: input, shape index: {}]
  %s1 = inlined_call_operand.vmem [shape: f32[116,64], index: 1, kind: input, shape index: {}]
  %s2 = inlined_call_operand.vmem [shape: f32[1,64], index: 2, kind: input, shape index: {}]
  %s3 = inlined_call_operand.vmem [shape: f32[2,81,64], index: 3, kind: output, shape index: {}]
  %s4 = sld [smem:[#allocation0]]
  $region45: #{_lambda_.2} parent=0
    _
  %s6 = ssub.s32 1, %s4
  %s7 = scalar_select 0, %s6, %s4
  loop: start=0, step=1, limit=4
  $region2: #{_lambda_.2} parent=0 // loop_pre_header
    _
  $region3: #{_lambda_.2} parent=0 // loop_header
    %s9 = sphi 0, %s13
    %p10 = scmp.ge.s32.totalorder %s9, 4
    %s19 = sphi 0, %s21
    %s22 = sphi 0, %s19
    %s23 = sphi 0, %s22
    %s39 = sphi 0, %s23
    %s43 = sphi 0, %s43
    %s45 = sphi 0, %s43
    %s46 = sphi 0, %s45
    %s60 = sphi 0, %s46
    %s64 = sphi 0, %s64
    %s66 = sphi 0, %s64
    %s67 = sphi 0, %s66
    %s81 = sphi 0, %s67
    %s87 = sphi 0, %s89
    %s90 = sphi 0, %s87
    %s91 = sphi 0, %s90
    %s107 = sphi 0, %s91
  $region4: #{_lambda_.2} parent=0 // loop_header_branch
    %12 = sbr.rel (%p10) target = $region8
  $region5: #{_lambda_.2} parent=0 // loop_body
    %s14 = ssub.s32 %s9, 1
    %s15 = ssub.s32 %s9, 2
    %s16 = sadd.s32 %s9, 1
    %s17 = ssub.s32 %s9, %s16
    %p18 = scmp.eq.s32.totalorder %s17, 0
    %s20 = sadd.s32 %s19, 1
    %s21 = scalar_select %p18, %s19, %s20
    %p24 = pneg %p18
    %p25 = scmp.eq.s32.totalorder %s9, 1
    %p26 = por %p24, %p25
    %p27 = scmp.ne.s32.totalorder %s19, %s22
    %p28 = scmp.eq.s32.totalorder %s9, 0
    %p29 = por %p27, %p28
    %p30 = scmp.ne.s32.totalorder %s19, %s22
    %p31 = scmp.eq.s32.totalorder %s14, 1
    %p32 = por %p30, %p31
    %p33 = scmp.ne.s32.totalorder %s22, %s23
    %p34 = scmp.eq.s32.totalorder %s14, 0
    %p35 = por %p33, %p34
    %p36 = scmp.ne.s32.totalorder %s22, %s23
    %p37 = scmp.eq.s32.totalorder %s15, 1
    %p38 = por %p36, %p37
    %p40 = scmp.ne.s32.totalorder %s23, %s39
    %p41 = scmp.eq.s32.totalorder %s15, 0
    %p42 = por %p40, %p41
    %s44 = sadd.s32 %s43, 1
    %p47 = scmp.eq.s32.totalorder %s9, 1
    %p48 = scmp.ne.s32.totalorder %s43, %s45
    %p49 = scmp.eq.s32.totalorder %s9, 0
    %p50 = por %p48, %p49
    %p51 = scmp.ne.s32.totalorder %s43, %s45
    %p52 = scmp.eq.s32.totalorder %s14, 1
    %p53 = por %p51, %p52
    %p54 = scmp.ne.s32.totalorder %s45, %s46
    %p55 = scmp.eq.s32.totalorder %s14, 0
    %p56 = por %p54, %p55
    %p57 = scmp.ne.s32.totalorder %s45, %s46
    %p58 = scmp.eq.s32.totalorder %s15, 1
    %p59 = por %p57, %p58
    %p61 = scmp.ne.s32.totalorder %s46, %s60
    %p62 = scmp.eq.s32.totalorder %s15, 0
    %p63 = por %p61, %p62
    %s65 = sadd.s32 %s64, 1
    %p68 = scmp.eq.s32.totalorder %s9, 1
    %p69 = scmp.ne.s32.totalorder %s64, %s66
    %p70 = scmp.eq.s32.totalorder %s9, 0
    %p71 = por %p69, %p70
    %p72 = scmp.ne.s32.totalorder %s64, %s66
    %p73 = scmp.eq.s32.totalorder %s14, 1
    %p74 = por %p72, %p73
    %p75 = scmp.ne.s32.totalorder %s66, %s67
    %p76 = scmp.eq.s32.totalorder %s14, 0
    %p77 = por %p75, %p76
    %p78 = scmp.ne.s32.totalorder %s66, %s67
    %p79 = scmp.eq.s32.totalorder %s15, 1
    %p80 = por %p78, %p79
    %p82 = scmp.ne.s32.totalorder %s67, %s81
    %p83 = scmp.eq.s32.totalorder %s15, 0
    %p84 = por %p82, %p83
    %s85 = ssub.s32 %s9, %s16
    %p86 = scmp.eq.s32.totalorder %s85, 0
    %s88 = sadd.s32 %s87, 1
    %s89 = scalar_select %p86, %s87, %s88
    %p92 = pneg %p86
    %p93 = scmp.eq.s32.totalorder %s9, 1
    %p94 = por %p92, %p93
    %p95 = scmp.ne.s32.totalorder %s87, %s90
    %p96 = scmp.eq.s32.totalorder %s9, 0
    %p97 = por %p95, %p96
    %p98 = scmp.ne.s32.totalorder %s87, %s90
    %p99 = scmp.eq.s32.totalorder %s14, 1
    %p100 = por %p98, %p99
    %p101 = scmp.ne.s32.totalorder %s90, %s91
    %p102 = scmp.eq.s32.totalorder %s14, 0
    %p103 = por %p101, %p102
    %p104 = scmp.ne.s32.totalorder %s90, %s91
    %p105 = scmp.eq.s32.totalorder %s15, 1
    %p106 = por %p104, %p105
    %p108 = scmp.ne.s32.totalorder %s91, %s107
    %p109 = scmp.eq.s32.totalorder %s15, 0
    %p110 = por %p108, %p109
    %p111 = scmp.le.s32.totalorder 1, %s9
    %p112 = scmp.lt.s32.totalorder %s9, 3
    %p113 = pnand %p111, %p112
    %p114 = pneg %p113
    // Predicated region
    $region9: #{_lambda_.2} parent=5 // pred_check
      _
    $region10: #{_lambda_.2} parent=5 // pred_check_branch
      %116 = sbr.rel (%p113) target = $region12
    $region11: #{_lambda_.2} parent=5 // pred_region
      %s117 = ssub.s32 %s9, 1
      // Predicated region
      $region13: #{_lambda_.2} parent=11 // pred_check
        %p118 = pneg %p56
      $region14: #{_lambda_.2} parent=11 // pred_check_branch
        %120 = sbr.rel (%p118) target = $region16
      $region15: #{_lambda_.2} parent=11 // pred_region
        _
      $region16: #{_lambda_.2} parent=11 // pred_fallthru
        _
      // Predicated region
      $region17: #{_lambda_.2} parent=11 // pred_check
        %p121 = pneg %p77
      $region18: #{_lambda_.2} parent=11 // pred_check_branch
        %123 = sbr.rel (%p121) target = $region20
      $region19: #{_lambda_.2} parent=11 // pred_region
        _
      $region20: #{_lambda_.2} parent=11 // pred_fallthru
        _
    $region12: #{_lambda_.2} parent=5 // pred_fallthru
      _
    %p124 = scmp.lt.s32.totalorder %s9, 2
    // Predicated region
    $region21: #{_lambda_.2} parent=5 // pred_check
      %p125 = pneg %p124
    $region22: #{_lambda_.2} parent=5 // pred_check_branch
      %127 = sbr.rel (%p125) target = $region24
    $region23: #{_lambda_.2} parent=5 // pred_region
      // Predicated region
      $region25: #{_lambda_.2} parent=23 // pred_check
        %p128 = pneg %p29
      $region26: #{_lambda_.2} parent=23 // pred_check_branch
        %130 = sbr.rel (%p128) target = $region28
      $region27: #{_lambda_.2} parent=23 // pred_region
        %p131 = scmp.lt.s32.totalorder %s9, 1
        %s132 = scalar_select %p131, %s9, 1
        %s133 = smul.addr %s132, 12
        %s134 = smul.addr %s133, 8
        %s135 = scalar_lea.vmem %s0, %s134
      $region28: #{_lambda_.2} parent=23 // pred_fallthru
        _
    $region24: #{_lambda_.2} parent=5 // pred_fallthru
      _
    %p136 = scmp.le.s32.totalorder 1, %s9
    %p137 = scmp.lt.s32.totalorder %s9, 3
    %p138 = pnand %p136, %p137
    %p139 = pneg %p138
    // Predicated region
    $region29: #{_lambda_.2} parent=5 // pred_check
      _
    $region30: #{_lambda_.2} parent=5 // pred_check_branch
      %141 = sbr.rel (%p138) target = $region32
    $region31: #{_lambda_.2} parent=5 // pred_region
      %s142 = ssub.s32 %s9, 1
      %p143 = scmp.lt.s32.totalorder %s14, 1
      %s144 = scalar_select %p143, %s14, 1
      %s145 = smul.addr %s144, 12
      %s146 = smul.addr %s145, 8
      %s147 = scalar_lea.vmem %s0, %s146
      %p148 = pneg %p35
      %p149 = pneg %p32
      %p150 = pneg %p56
      %p151 = pneg %p53
      %p152 = pneg %p77
      %p153 = pneg %p74
      %p154 = pneg %p103
      %p155 = pneg %p100
      %p156 = scmp.lt.s32.totalorder %s14, 1
      %s157 = scalar_select %p156, %s14, 1
      %s158 = smul.addr %s157, 11
      %s159 = smul.addr %s158, 8
      %s160 = scalar_lea.vmem %s3, %s159
      %p161 = scmp.lt.s32.totalorder %s14, 1
      %s162 = scalar_select %p161, %s14, 1
      %s163 = smul.addr %s162, 12
      %s164 = smul.addr %s163, 8
      %s165 = scalar_lea.vmem %s0, %s164
      %p166 = scmp.lt.s32.totalorder %s14, 1
      %s167 = scalar_select %p166, %s14, 1
      %s168 = smul.addr %s167, 11
      %s169 = smul.addr %s168, 8
      %s170 = scalar_lea.vmem %s3, %s169
      %v171 = vld [vmem:[%s165] sm:$0xff]
      %v172 = vld [vmem:[%s165 + $0x8] sm:$0xff]
      %v173 = vld [vmem:[%s165 + $0x10] sm:$0xff]
      %v174 = vld [vmem:[%s165 + $0x18] sm:$0xff]
      %v175 = vld [vmem:[%s165 + $0x20] sm:$0xff]
      %v176 = vld [vmem:[%s165 + $0x28] sm:$0xff]
      %v177 = vld [vmem:[%s165 + $0x30] sm:$0xff]
      %v178 = vld [vmem:[%s165 + $0x38] sm:$0xff]
      %v179 = vld [vmem:[%s165 + $0x40] sm:$0xff]
      %v180 = vld [vmem:[%s165 + $0x48] sm:$0xff]
      %v181 = vld [vmem:[%s165 + $0x50] sm:$0x1]
      %v182 = vld [vmem:[%s1] sm:$0xff]
      %v183 = vld [vmem:[%s1 + $0x8] sm:$0xff]
      %v184 = vld [vmem:[%s1 + $0x10] sm:$0xff]
      %v185 = vld [vmem:[%s1 + $0x18] sm:$0x1f]
      %v186 = vld [vmem:[%s165 + $0x1] sm:$0xff]
      %v187 = vld [vmem:[%s165 + $0x9] sm:$0xff]
      %v188 = vld [vmem:[%s165 + $0x11] sm:$0xff]
      %v189 = vld [vmem:[%s165 + $0x19] sm:$0xff]
      %v190 = vld [vmem:[%s165 + $0x21] sm:$0xff]
      %v191 = vld [vmem:[%s165 + $0x29] sm:$0xff]
      %v192 = vld [vmem:[%s165 + $0x31] sm:$0xff]
      %v193 = vld [vmem:[%s165 + $0x39] sm:$0xff]
      %v194 = vld [vmem:[%s165 + $0x41] sm:$0xff]
      %v195 = vld [vmem:[%s165 + $0x49] sm:$0xff]
      %v196 = vld [vmem:[%s165 + $0x51] sm:$0x1]
      %v197 = vld [vmem:[%s1 + $0x1d] sm:$0xff]
      %v198 = vld [vmem:[%s1 + $0x25] sm:$0xff]
      %v199 = vld [vmem:[%s1 + $0x2d] sm:$0xff]
      %v200 = vld [vmem:[%s1 + $0x35] sm:$0x1f]
      %vm201 = vcmask 236544
      %v203 = vsel %vm201, %v186, 0
      %v206 = vsel %vm201, %v187, 0
      %v209 = vsel %vm201, %v188, 0
      %v212 = vsel %vm201, %v189, 0
      %v215 = vsel %vm201, %v190, 0
      %v218 = vsel %vm201, %v191, 0
      %v221 = vsel %vm201, %v192, 0
      %v224 = vsel %vm201, %v193, 0
      %v227 = vsel %vm201, %v194, 0
      %v230 = vsel %vm201, %v195, 0
      %v233 = vsel %vm201, %v196, 0
      %vm235 = vcmask 1044480
      %v237 = vsel %vm235, %v200, 0
      %239 = vmatpush.msra.mxu0 0.0
      %240 = vmatpush.msra.mxu0 0.0
      %241 = vmatpush.msra.mxu0 0.0
      %242 = vmatpush.msra.mxu0 0.0
      %243 = vmatpush.msra.mxu0 0.0
      %244 = vmatpush.msra.mxu0 0.0
      %245 = vmatpush.msra.mxu0 0.0
      %246 = vmatpush.msra.mxu0 0.0
      %247 = vmatpush.msra.mxu0 0.0
      %248 = vmatpush.msra.mxu0 0.0
      %249 = vmatpush.msra.mxu0 0.0
      %250 = vmatpush.msra.mxu0 0.0
      %251 = vmatpush.msra.mxu0 %v237
      %252 = vmatpush.msra.mxu0 %v199
      %253 = vmatpush.msra.mxu0 %v198
      %254 = vmatpush.msra.mxu0 %v197
      %255 = vmatmul.f32.gmra.mxu0 %v203
      %v256 = vpop.f32.mrf.mxu0
      %v257 = vadd.f32 0.0, %v256
      %258 = vmatmul.f32.gmra.mxu0 %v206
      %v259 = vpop.f32.mrf.mxu0
      %v260 = vadd.f32 0.0, %v259
      %261 = vmatmul.f32.gmra.mxu0 %v209
      %v262 = vpop.f32.mrf.mxu0
      %v263 = vadd.f32 0.0, %v262
      %264 = vmatmul.f32.gmra.mxu0 %v212
      %v265 = vpop.f32.mrf.mxu0
      %v266 = vadd.f32 0.0, %v265
      %267 = vmatmul.f32.gmra.mxu0 %v215
      %v268 = vpop.f32.mrf.mxu0
      %v269 = vadd.f32 0.0, %v268
      %270 = vmatmul.f32.gmra.mxu0 %v218
      %v271 = vpop.f32.mrf.mxu0
      %v272 = vadd.f32 0.0, %v271
      %273 = vmatmul.f32.gmra.mxu0 %v221
      %v274 = vpop.f32.mrf.mxu0
      %v275 = vadd.f32 0.0, %v274
      %276 = vmatmul.f32.gmra.mxu0 %v224
      %v277 = vpop.f32.mrf.mxu0
      %v278 = vadd.f32 0.0, %v277
      %279 = vmatmul.f32.gmra.mxu0 %v227
      %v280 = vpop.f32.mrf.mxu0
      %v281 = vadd.f32 0.0, %v280
      %282 = vmatmul.f32.gmra.mxu0 %v230
      %v283 = vpop.f32.mrf.mxu0
      %v284 = vadd.f32 0.0, %v283
      %285 = vmatmul.f32.gmra.mxu0 %v233
      %v286 = vpop.f32.mrf.mxu0
      %v287 = vadd.f32 0.0, %v286
      %288 = vdwg.mxu0
      %v290 = vsel %vm201, %v171, 0
      %v293 = vsel %vm201, %v172, 0
      %v296 = vsel %vm201, %v173, 0
      %v299 = vsel %vm201, %v174, 0
      %v302 = vsel %vm201, %v175, 0
      %v305 = vsel %vm201, %v176, 0
      %v308 = vsel %vm201, %v177, 0
      %v311 = vsel %vm201, %v178, 0
      %v314 = vsel %vm201, %v179, 0
      %v317 = vsel %vm201, %v180, 0
      %v320 = vsel %vm201, %v181, 0
      %v323 = vsel %vm235, %v185, 0
      %325 = vmatpush.msra.mxu0 0.0
      %326 = vmatpush.msra.mxu0 0.0
      %327 = vmatpush.msra.mxu0 0.0
      %328 = vmatpush.msra.mxu0 0.0
      %329 = vmatpush.msra.mxu0 0.0
      %330 = vmatpush.msra.mxu0 0.0
      %331 = vmatpush.msra.mxu0 0.0
      %332 = vmatpush.msra.mxu0 0.0
      %333 = vmatpush.msra.mxu0 0.0
      %334 = vmatpush.msra.mxu0 0.0
      %335 = vmatpush.msra.mxu0 0.0
      %336 = vmatpush.msra.mxu0 0.0
      %337 = vmatpush.msra.mxu0 %v323
      %338 = vmatpush.msra.mxu0 %v184
      %339 = vmatpush.msra.mxu0 %v183
      %340 = vmatpush.msra.mxu0 %v182
      %341 = vmatmul.f32.gmra.mxu0 %v290
      %v342 = vpop.f32.mrf.mxu0
      %v343 = vadd.f32 %v257, %v342
      %344 = vmatmul.f32.gmra.mxu0 %v293
      %v345 = vpop.f32.mrf.mxu0
      %v346 = vadd.f32 %v260, %v345
      %347 = vmatmul.f32.gmra.mxu0 %v296
      %v348 = vpop.f32.mrf.mxu0
      %v349 = vadd.f32 %v263, %v348
      %350 = vmatmul.f32.gmra.mxu0 %v299
      %v351 = vpop.f32.mrf.mxu0
      %v352 = vadd.f32 %v266, %v351
      %353 = vmatmul.f32.gmra.mxu0 %v302
      %v354 = vpop.f32.mrf.mxu0
      %v355 = vadd.f32 %v269, %v354
      %356 = vmatmul.f32.gmra.mxu0 %v305
      %v357 = vpop.f32.mrf.mxu0
      %v358 = vadd.f32 %v272, %v357
      %359 = vmatmul.f32.gmra.mxu0 %v308
      %v360 = vpop.f32.mrf.mxu0
      %v361 = vadd.f32 %v275, %v360
      %362 = vmatmul.f32.gmra.mxu0 %v311
      %v363 = vpop.f32.mrf.mxu0
      %v364 = vadd.f32 %v278, %v363
      %365 = vmatmul.f32.gmra.mxu0 %v314
      %v366 = vpop.f32.mrf.mxu0
      %v367 = vadd.f32 %v281, %v366
      %368 = vmatmul.f32.gmra.mxu0 %v317
      %v369 = vpop.f32.mrf.mxu0
      %v370 = vadd.f32 %v284, %v369
      %371 = vmatmul.f32.gmra.mxu0 %v320
      %v372 = vpop.f32.mrf.mxu0
      %v373 = vadd.f32 %v287, %v372
      %374 = vdwg.mxu0
      %v375 = vld [vmem:[%s165 + $0x9] sm:$0xff]
      %v376 = vld [vmem:[%s165 + $0x11] sm:$0xff]
      %v377 = vld [vmem:[%s165 + $0x19] sm:$0xff]
      %v378 = vld [vmem:[%s165 + $0x21] sm:$0xff]
      %v379 = vld [vmem:[%s165 + $0x29] sm:$0xff]
      %v380 = vld [vmem:[%s165 + $0x31] sm:$0xff]
      %v381 = vld [vmem:[%s165 + $0x39] sm:$0xff]
      %v382 = vld [vmem:[%s165 + $0x41] sm:$0xff]
      %v383 = vld [vmem:[%s165 + $0x49] sm:$0xff]
      %v384 = vld [vmem:[%s165 + $0x51] sm:$0xff]
      %v385 = vld [vmem:[%s165 + $0x59] sm:$0x1]
      %v386 = vld [vmem:[%s1 + $0x3a] sm:$0xff]
      %v387 = vld [vmem:[%s1 + $0x42] sm:$0xff]
      %v388 = vld [vmem:[%s1 + $0x4a] sm:$0xff]
      %v389 = vld [vmem:[%s1 + $0x52] sm:$0x1f]
      %v391 = vsel %vm201, %v375, 0
      %v394 = vsel %vm201, %v376, 0
      %v397 = vsel %vm201, %v377, 0
      %v400 = vsel %vm201, %v378, 0
      %v403 = vsel %vm201, %v379, 0
      %v406 = vsel %vm201, %v380, 0
      %v409 = vsel %vm201, %v381, 0
      %v412 = vsel %vm201, %v382, 0
      %v415 = vsel %vm201, %v383, 0
      %v418 = vsel %vm201, %v384, 0
      %v421 = vsel %vm201, %v385, 0
      %v424 = vsel %vm235, %v389, 0
      %426 = vmatpush.msra.mxu0 0.0
      %427 = vmatpush.msra.mxu0 0.0
      %428 = vmatpush.msra.mxu0 0.0
      %429 = vmatpush.msra.mxu0 0.0
      %430 = vmatpush.msra.mxu0 0.0
      %431 = vmatpush.msra.mxu0 0.0
      %432 = vmatpush.msra.mxu0 0.0
      %433 = vmatpush.msra.mxu0 0.0
      %434 = vmatpush.msra.mxu0 0.0
      %435 = vmatpush.msra.mxu0 0.0
      %436 = vmatpush.msra.mxu0 0.0
      %437 = vmatpush.msra.mxu0 0.0
      %438 = vmatpush.msra.mxu0 %v424
      %439 = vmatpush.msra.mxu0 %v388
      %440 = vmatpush.msra.mxu0 %v387
      %441 = vmatpush.msra.mxu0 %v386
      %442 = vmatmul.f32.gmra.mxu0 %v391
      %v443 = vpop.f32.mrf.mxu0
      %v444 = vadd.f32 0.0, %v443
      %445 = vmatmul.f32.gmra.mxu0 %v394
      %v446 = vpop.f32.mrf.mxu0
      %v447 = vadd.f32 0.0, %v446
      %448 = vmatmul.f32.gmra.mxu0 %v397
      %v449 = vpop.f32.mrf.mxu0
      %v450 = vadd.f32 0.0, %v449
      %451 = vmatmul.f32.gmra.mxu0 %v400
      %v452 = vpop.f32.mrf.mxu0
      %v453 = vadd.f32 0.0, %v452
      %454 = vmatmul.f32.gmra.mxu0 %v403
      %v455 = vpop.f32.mrf.mxu0
      %v456 = vadd.f32 0.0, %v455
      %457 = vmatmul.f32.gmra.mxu0 %v406
      %v458 = vpop.f32.mrf.mxu0
      %v459 = vadd.f32 0.0, %v458
      %460 = vmatmul.f32.gmra.mxu0 %v409
      %v461 = vpop.f32.mrf.mxu0
      %v462 = vadd.f32 0.0, %v461
      %463 = vmatmul.f32.gmra.mxu0 %v412
      %v464 = vpop.f32.mrf.mxu0
      %v465 = vadd.f32 0.0, %v464
      %466 = vmatmul.f32.gmra.mxu0 %v415
      %v467 = vpop.f32.mrf.mxu0
      %v468 = vadd.f32 0.0, %v467
      %469 = vmatmul.f32.gmra.mxu0 %v418
      %v470 = vpop.f32.mrf.mxu0
      %v471 = vadd.f32 0.0, %v470
      %472 = vmatmul.f32.gmra.mxu0 %v421
      %v473 = vpop.f32.mrf.mxu0
      %v474 = vadd.f32 0.0, %v473
      %475 = vdwg.mxu0
      %v476 = vadd.f32 %v343, %v444
      %v477 = vadd.f32 %v346, %v447
      %v478 = vadd.f32 %v349, %v450
      %v479 = vadd.f32 %v352, %v453
      %v480 = vadd.f32 %v355, %v456
      %v481 = vadd.f32 %v358, %v459
      %v482 = vadd.f32 %v361, %v462
      %v483 = vadd.f32 %v364, %v465
      %v484 = vadd.f32 %v367, %v468
      %v485 = vadd.f32 %v370, %v471
      %v486 = vadd.f32 %v373, %v474
      %v487 = vld [vmem:[%s165 + $0xa] sm:$0xff]
      %v488 = vld [vmem:[%s165 + $0x12] sm:$0xff]
      %v489 = vld [vmem:[%s165 + $0x1a] sm:$0xff]
      %v490 = vld [vmem:[%s165 + $0x22] sm:$0xff]
      %v491 = vld [vmem:[%s165 + $0x2a] sm:$0xff]
      %v492 = vld [vmem:[%s165 + $0x32] sm:$0xff]
      %v493 = vld [vmem:[%s165 + $0x3a] sm:$0xff]
      %v494 = vld [vmem:[%s165 + $0x42] sm:$0xff]
      %v495 = vld [vmem:[%s165 + $0x4a] sm:$0xff]
      %v496 = vld [vmem:[%s165 + $0x52] sm:$0xff]
      %v497 = vld [vmem:[%s165 + $0x5a] sm:$0x1]
      %v498 = vld [vmem:[%s1 + $0x57] sm:$0xff]
      %v499 = vld [vmem:[%s1 + $0x5f] sm:$0xff]
      %v500 = vld [vmem:[%s1 + $0x67] sm:$0xff]
      %v501 = vld [vmem:[%s1 + $0x6f] sm:$0x1f]
      %v503 = vsel %vm201, %v487, 0
      %v506 = vsel %vm201, %v488, 0
      %v509 = vsel %vm201, %v489, 0
      %v512 = vsel %vm201, %v490, 0
      %v515 = vsel %vm201, %v491, 0
      %v518 = vsel %vm201, %v492, 0
      %v521 = vsel %vm201, %v493, 0
      %v524 = vsel %vm201, %v494, 0
      %v527 = vsel %vm201, %v495, 0
      %v530 = vsel %vm201, %v496, 0
      %v533 = vsel %vm201, %v497, 0
      %v536 = vsel %vm235, %v501, 0
      %538 = vmatpush.msra.mxu0 0.0
      %539 = vmatpush.msra.mxu0 0.0
      %540 = vmatpush.msra.mxu0 0.0
      %541 = vmatpush.msra.mxu0 0.0
      %542 = vmatpush.msra.mxu0 0.0
      %543 = vmatpush.msra.mxu0 0.0
      %544 = vmatpush.msra.mxu0 0.0
      %545 = vmatpush.msra.mxu0 0.0
      %546 = vmatpush.msra.mxu0 0.0
      %547 = vmatpush.msra.mxu0 0.0
      %548 = vmatpush.msra.mxu0 0.0
      %549 = vmatpush.msra.mxu0 0.0
      %550 = vmatpush.msra.mxu0 %v536
      %551 = vmatpush.msra.mxu0 %v500
      %552 = vmatpush.msra.mxu0 %v499
      %553 = vmatpush.msra.mxu0 %v498
      %554 = vmatmul.f32.gmra.mxu0 %v503
      %v555 = vpop.f32.mrf.mxu0
      %v556 = vadd.f32 0.0, %v555
      %557 = vmatmul.f32.gmra.mxu0 %v506
      %v558 = vpop.f32.mrf.mxu0
      %v559 = vadd.f32 0.0, %v558
      %560 = vmatmul.f32.gmra.mxu0 %v509
      %v561 = vpop.f32.mrf.mxu0
      %v562 = vadd.f32 0.0, %v561
      %563 = vmatmul.f32.gmra.mxu0 %v512
      %v564 = vpop.f32.mrf.mxu0
      %v565 = vadd.f32 0.0, %v564
      %566 = vmatmul.f32.gmra.mxu0 %v515
      %v567 = vpop.f32.mrf.mxu0
      %v568 = vadd.f32 0.0, %v567
      %569 = vmatmul.f32.gmra.mxu0 %v518
      %v570 = vpop.f32.mrf.mxu0
      %v571 = vadd.f32 0.0, %v570
      %572 = vmatmul.f32.gmra.mxu0 %v521
      %v573 = vpop.f32.mrf.mxu0
      %v574 = vadd.f32 0.0, %v573
      %575 = vmatmul.f32.gmra.mxu0 %v524
      %v576 = vpop.f32.mrf.mxu0
      %v577 = vadd.f32 0.0, %v576
      %578 = vmatmul.f32.gmra.mxu0 %v527
      %v579 = vpop.f32.mrf.mxu0
      %v580 = vadd.f32 0.0, %v579
      %581 = vmatmul.f32.gmra.mxu0 %v530
      %v582 = vpop.f32.mrf.mxu0
      %v583 = vadd.f32 0.0, %v582
      %584 = vmatmul.f32.gmra.mxu0 %v533
      %v585 = vpop.f32.mrf.mxu0
      %v586 = vadd.f32 0.0, %v585
      %587 = vdwg.mxu0
      %v588 = vadd.f32 %v476, %v556
      %v589 = vadd.f32 %v477, %v559
      %v590 = vadd.f32 %v478, %v562
      %v591 = vadd.f32 %v479, %v565
      %v592 = vadd.f32 %v480, %v568
      %v593 = vadd.f32 %v481, %v571
      %v594 = vadd.f32 %v482, %v574
      %v595 = vadd.f32 %v483, %v577
      %v596 = vadd.f32 %v484, %v580
      %v597 = vadd.f32 %v485, %v583
      %v598 = vadd.f32 %v486, %v586
      %v599 = vld [vmem:[%s2] sm:$0x1]
      %v601 = vperm.slane %v599, 0
      %v603 = vadd.f32 %v588, %v601
      %v604 = vadd.f32 %v589, %v601
      %v605 = vadd.f32 %v590, %v601
      %v606 = vadd.f32 %v591, %v601
      %v607 = vadd.f32 %v592, %v601
      %v608 = vadd.f32 %v593, %v601
      %v609 = vadd.f32 %v594, %v601
      %v610 = vadd.f32 %v595, %v601
      %v611 = vadd.f32 %v596, %v601
      %v612 = vadd.f32 %v597, %v601
      %v613 = vadd.f32 %v598, %v601
      %vm614 = vcmask 523264
      %615 = vst.msk [vmem:[%s170] sm:$0xff] %vm614, %v603
      %616 = vst.msk [vmem:[%s170 + $0x8] sm:$0xff] %vm614, %v604
      %617 = vst.msk [vmem:[%s170 + $0x10] sm:$0xff] %vm614, %v605
      %618 = vst.msk [vmem:[%s170 + $0x18] sm:$0xff] %vm614, %v606
      %619 = vst.msk [vmem:[%s170 + $0x20] sm:$0xff] %vm614, %v607
      %620 = vst.msk [vmem:[%s170 + $0x28] sm:$0xff] %vm614, %v608
      %621 = vst.msk [vmem:[%s170 + $0x30] sm:$0xff] %vm614, %v609
      %622 = vst.msk [vmem:[%s170 + $0x38] sm:$0xff] %vm614, %v610
      %623 = vst.msk [vmem:[%s170 + $0x40] sm:$0xff] %vm614, %v611
      %624 = vst.msk [vmem:[%s170 + $0x48] sm:$0xff] %vm614, %v612
      %vm625 = vcmask 516096
      %626 = vst.msk [vmem:[%s170 + $0x50] sm:$0x1] %vm625, %v613
      %p627 = scmp.lt.s32.totalorder %s14, 1
      %s628 = scalar_select %p627, %s14, 1
      %s629 = smul.addr %s628, 11
      %s630 = smul.addr %s629, 8
      %s631 = scalar_lea.vmem %s3, %s630
      // Predicated region
      $region33: #{_lambda_.2} parent=31 // pred_check
        %p632 = pneg %p100
      $region34: #{_lambda_.2} parent=31 // pred_check_branch
        %634 = sbr.rel (%p632) target = $region36
      $region35: #{_lambda_.2} parent=31 // pred_region
        _
      $region36: #{_lambda_.2} parent=31 // pred_fallthru
        _
    $region32: #{_lambda_.2} parent=5 // pred_fallthru
      _
    %p635 = scmp.le.s32.totalorder 2, %s9
    // Predicated region
    $region37: #{_lambda_.2} parent=5 // pred_check
      %p636 = pneg %p635
    $region38: #{_lambda_.2} parent=5 // pred_check_branch
      %638 = sbr.rel (%p636) target = $region40
    $region39: #{_lambda_.2} parent=5 // pred_region
      %s639 = ssub.s32 %s9, 2
      // Predicated region
      $region41: #{_lambda_.2} parent=39 // pred_check
        %p640 = pneg %p106
      $region42: #{_lambda_.2} parent=39 // pred_check_branch
        %642 = sbr.rel (%p640) target = $region44
      $region43: #{_lambda_.2} parent=39 // pred_region
        %p643 = scmp.lt.s32.totalorder %s15, 1
        %s644 = scalar_select %p643, %s15, 1
        %s645 = smul.addr %s644, 11
        %s646 = smul.addr %s645, 8
        %s647 = scalar_lea.vmem %s3, %s646
      $region44: #{_lambda_.2} parent=39 // pred_fallthru
        _
    $region40: #{_lambda_.2} parent=5 // pred_fallthru
      _
  $region6: #{_lambda_.2} parent=0 // loop_footer
    %s13 = sadd.s32 1, %s9
  $region7: #{_lambda_.2} parent=0 // loop_footer_branch
    %8 = sbr.rel target = $region3
  $region8: #{_lambda_.2} parent=0 // loop_exit
    _

// kernel: tile.14
$region0: #{tile.14}
  #allocation0 [shape = 's32[1]{0}', space=sflag, size = 0x4, scoped, tag = 'scoped memory for tile.14']
  %s0 = inlined_call_operand.vmem [shape: f32[8], index: 0, kind: input, shape index: {}]
  %s1 = inlined_call_operand.vmem [shape: f32[4,8], index: 1, kind: output, shape index: {}]
  // Predicated region
  $region2: #{tile.14} parent=0 // pred_check
    _
  $region3: #{tile.14} parent=0 // pred_check_branch
    %3 = sbr.rel (0) target = $region5
  $region4: #{tile.14} parent=0 // pred_region
    _
  $region5: #{tile.14} parent=0 // pred_fallthru
    _
  %v4 = vld [vmem:[%s0] ss:$0 sm:$0xff]
  %5 = vst [vmem:[%s1] sm:$0xf] %v4

// kernel: tile.15
$region0: #{tile.15}
  %s0 = inlined_call_operand.vmem [shape: f32[4,8], index: 0, kind: input, shape index: {}]
  %s1 = inlined_call_operand.vmem [shape: f32[1,32], index: 1, kind: output, shape index: {}]
  $region1: #{tile.15} parent=0
    #allocation0 [shape = 'u8[4096]{0}', space=vmem, size = 0x1000, scoped, tag = 'scoped mem for output reshape']
    #allocation1 [shape = 'u8[4096]{0}', space=vmem, size = 0x1000, scoped, tag = 'scoped mem for input reshape']
    %s3 = ssub.s32 16, 1
    %v4 = vld [vmem:[%s0] sm:%s3]
    %5 = vst [vmem:[#allocation1] sm:%s3] %v4
    %v6 = vld [vmem:[#allocation1] sm:$0x1]
    %vm7 = vcmask 64512
    %8 = vst.msk [vmem:[#allocation0] sm:$0x1] %vm7, %v6
    %s9 = scalar_lea.vmem [#allocation1], 3
    %v10 = vld [vmem:[%s9] sm:$0x1]
    %11 = vrot.lane.b32.xlu0 %v10, 24
    %v12 = vpop.permute.xlu0 %11
    %vm13 = vcmask 261312
    %14 = vst.msk [vmem:[#allocation0] sm:$0x1] %vm13, %v12
    %s15 = scalar_lea.vmem [#allocation1], 2
    %v16 = vld [vmem:[%s15] sm:$0x1]
    %17 = vrot.lane.b32.xlu0 %v16, 16
    %v18 = vpop.permute.xlu0 %17
    %vm19 = vcmask 195712
    %20 = vst.msk [vmem:[#allocation0] sm:$0x1] %vm19, %v18
    %s21 = scalar_lea.vmem [#allocation1], 1
    %v22 = vld [vmem:[%s21] sm:$0x1]
    %23 = vrot.lane.b32.xlu0 %v22, 8
    %v24 = vpop.permute.xlu0 %23
    %vm25 = vcmask 130112
    %26 = vst.msk [vmem:[#allocation0] sm:$0x1] %vm25, %v24
    %s28 = ssub.s32 2, 1
    %v29 = vld [vmem:[#allocation0] sm:%s28]
    %s31 = ssub.s32 2, 1
    %32 = vst [vmem:[%s1] sm:%s31] %v29

// kernel: _lambda_.3
$region0: #{_lambda_.3}
  #allocation0 [shape = 'u32[]', space=smem, size = 0x4, offset = 0x4, fixed_abs, tag = 'smem constant byte address 0x4 - core index']
  #allocation1 [shape = 'u32[72,128]{1,0:T(1,128)}', space=vmem, size = 0x9000, scoped, tag = 'internal scratch']
  %s0 = inlined_call_operand.vmem [shape: f32[2,312,16], index: 0, kind: input, shape index: {}]
  %s1 = inlined_call_operand.vmem [shape: f32[2,289,24], index: 1, kind: input, shape index: {}]
  %s2 = inlined_call_operand.vmem [shape: f32[64,32], index: 2, kind: input, shape index: {}]
  %s3 = inlined_call_operand.vmem [shape: f32[24,32], index: 3, kind: input, shape index: {}]
  %s4 = inlined_call_operand.vmem [shape: f32[1,32], index: 4, kind: input, shape index: {}]
  %s5 = inlined_call_operand.vmem [shape: f32[2,289,32], index: 5, kind: output, shape index: {}]
  %s6 = sld [smem:[#allocation0]]
  $region53: #{_lambda_.3} parent=0
    _
  %s8 = ssub.s32 1, %s6
  %s9 = scalar_select 0, %s8, %s6
  loop: start=0, step=1, limit=4
  $region2: #{_lambda_.3} parent=0 // loop_pre_header
    _
  $region3: #{_lambda_.3} parent=0 // loop_header
    %s11 = sphi 0, %s15
    %p12 = scmp.ge.s32.totalorder %s11, 4
    %s21 = sphi 0, %s23
    %s24 = sphi 0, %s21
    %s25 = sphi 0, %s24
    %s41 = sphi 0, %s25
    %s47 = sphi 0, %s49
    %s50 = sphi 0, %s47
    %s51 = sphi 0, %s50
    %s67 = sphi 0, %s51
    %s71 = sphi 0, %s71
    %s73 = sphi 0, %s71
    %s74 = sphi 0, %s73
    %s88 = sphi 0, %s74
    %s92 = sphi 0, %s92
    %s94 = sphi 0, %s92
    %s95 = sphi 0, %s94
    %s109 = sphi 0, %s95
    %s113 = sphi 0, %s113
    %s115 = sphi 0, %s113
    %s116 = sphi 0, %s115
    %s130 = sphi 0, %s116
    %s136 = sphi 0, %s138
    %s139 = sphi 0, %s136
    %s140 = sphi 0, %s139
    %s156 = sphi 0, %s140
  $region4: #{_lambda_.3} parent=0 // loop_header_branch
    %14 = sbr.rel (%p12) target = $region8
  $region5: #{_lambda_.3} parent=0 // loop_body
    %s16 = ssub.s32 %s11, 1
    %s17 = ssub.s32 %s11, 2
    %s18 = sadd.s32 %s11, 1
    %s19 = ssub.s32 %s11, %s18
    %p20 = scmp.eq.s32.totalorder %s19, 0
    %s22 = sadd.s32 %s21, 1
    %s23 = scalar_select %p20, %s21, %s22
    %p26 = pneg %p20
    %p27 = scmp.eq.s32.totalorder %s11, 1
    %p28 = por %p26, %p27
    %p29 = scmp.ne.s32.totalorder %s21, %s24
    %p30 = scmp.eq.s32.totalorder %s11, 0
    %p31 = por %p29, %p30
    %p32 = scmp.ne.s32.totalorder %s21, %s24
    %p33 = scmp.eq.s32.totalorder %s16, 1
    %p34 = por %p32, %p33
    %p35 = scmp.ne.s32.totalorder %s24, %s25
    %p36 = scmp.eq.s32.totalorder %s16, 0
    %p37 = por %p35, %p36
    %p38 = scmp.ne.s32.totalorder %s24, %s25
    %p39 = scmp.eq.s32.totalorder %s17, 1
    %p40 = por %p38, %p39
    %p42 = scmp.ne.s32.totalorder %s25, %s41
    %p43 = scmp.eq.s32.totalorder %s17, 0
    %p44 = por %p42, %p43
    %s45 = ssub.s32 %s11, %s18
    %p46 = scmp.eq.s32.totalorder %s45, 0
    %s48 = sadd.s32 %s47, 1
    %s49 = scalar_select %p46, %s47, %s48
    %p52 = pneg %p46
    %p53 = scmp.eq.s32.totalorder %s11, 1
    %p54 = por %p52, %p53
    %p55 = scmp.ne.s32.totalorder %s47, %s50
    %p56 = scmp.eq.s32.totalorder %s11, 0
    %p57 = por %p55, %p56
    %p58 = scmp.ne.s32.totalorder %s47, %s50
    %p59 = scmp.eq.s32.totalorder %s16, 1
    %p60 = por %p58, %p59
    %p61 = scmp.ne.s32.totalorder %s50, %s51
    %p62 = scmp.eq.s32.totalorder %s16, 0
    %p63 = por %p61, %p62
    %p64 = scmp.ne.s32.totalorder %s50, %s51
    %p65 = scmp.eq.s32.totalorder %s17, 1
    %p66 = por %p64, %p65
    %p68 = scmp.ne.s32.totalorder %s51, %s67
    %p69 = scmp.eq.s32.totalorder %s17, 0
    %p70 = por %p68, %p69
    %s72 = sadd.s32 %s71, 1
    %p75 = scmp.eq.s32.totalorder %s11, 1
    %p76 = scmp.ne.s32.totalorder %s71, %s73
    %p77 = scmp.eq.s32.totalorder %s11, 0
    %p78 = por %p76, %p77
    %p79 = scmp.ne.s32.totalorder %s71, %s73
    %p80 = scmp.eq.s32.totalorder %s16, 1
    %p81 = por %p79, %p80
    %p82 = scmp.ne.s32.totalorder %s73, %s74
    %p83 = scmp.eq.s32.totalorder %s16, 0
    %p84 = por %p82, %p83
    %p85 = scmp.ne.s32.totalorder %s73, %s74
    %p86 = scmp.eq.s32.totalorder %s17, 1
    %p87 = por %p85, %p86
    %p89 = scmp.ne.s32.totalorder %s74, %s88
    %p90 = scmp.eq.s32.totalorder %s17, 0
    %p91 = por %p89, %p90
    %s93 = sadd.s32 %s92, 1
    %p96 = scmp.eq.s32.totalorder %s11, 1
    %p97 = scmp.ne.s32.totalorder %s92, %s94
    %p98 = scmp.eq.s32.totalorder %s11, 0
    %p99 = por %p97, %p98
    %p100 = scmp.ne.s32.totalorder %s92, %s94
    %p101 = scmp.eq.s32.totalorder %s16, 1
    %p102 = por %p100, %p101
    %p103 = scmp.ne.s32.totalorder %s94, %s95
    %p104 = scmp.eq.s32.totalorder %s16, 0
    %p105 = por %p103, %p104
    %p106 = scmp.ne.s32.totalorder %s94, %s95
    %p107 = scmp.eq.s32.totalorder %s17, 1
    %p108 = por %p106, %p107
    %p110 = scmp.ne.s32.totalorder %s95, %s109
    %p111 = scmp.eq.s32.totalorder %s17, 0
    %p112 = por %p110, %p111
    %s114 = sadd.s32 %s113, 1
    %p117 = scmp.eq.s32.totalorder %s11, 1
    %p118 = scmp.ne.s32.totalorder %s113, %s115
    %p119 = scmp.eq.s32.totalorder %s11, 0
    %p120 = por %p118, %p119
    %p121 = scmp.ne.s32.totalorder %s113, %s115
    %p122 = scmp.eq.s32.totalorder %s16, 1
    %p123 = por %p121, %p122
    %p124 = scmp.ne.s32.totalorder %s115, %s116
    %p125 = scmp.eq.s32.totalorder %s16, 0
    %p126 = por %p124, %p125
    %p127 = scmp.ne.s32.totalorder %s115, %s116
    %p128 = scmp.eq.s32.totalorder %s17, 1
    %p129 = por %p127, %p128
    %p131 = scmp.ne.s32.totalorder %s116, %s130
    %p132 = scmp.eq.s32.totalorder %s17, 0
    %p133 = por %p131, %p132
    %s134 = ssub.s32 %s11, %s18
    %p135 = scmp.eq.s32.totalorder %s134, 0
    %s137 = sadd.s32 %s136, 1
    %s138 = scalar_select %p135, %s136, %s137
    %p141 = pneg %p135
    %p142 = scmp.eq.s32.totalorder %s11, 1
    %p143 = por %p141, %p142
    %p144 = scmp.ne.s32.totalorder %s136, %s139
    %p145 = scmp.eq.s32.totalorder %s11, 0
    %p146 = por %p144, %p145
    %p147 = scmp.ne.s32.totalorder %s136, %s139
    %p148 = scmp.eq.s32.totalorder %s16, 1
    %p149 = por %p147, %p148
    %p150 = scmp.ne.s32.totalorder %s139, %s140
    %p151 = scmp.eq.s32.totalorder %s16, 0
    %p152 = por %p150, %p151
    %p153 = scmp.ne.s32.totalorder %s139, %s140
    %p154 = scmp.eq.s32.totalorder %s17, 1
    %p155 = por %p153, %p154
    %p157 = scmp.ne.s32.totalorder %s140, %s156
    %p158 = scmp.eq.s32.totalorder %s17, 0
    %p159 = por %p157, %p158
    %p160 = scmp.le.s32.totalorder 1, %s11
    %p161 = scmp.lt.s32.totalorder %s11, 3
    %p162 = pnand %p160, %p161
    %p163 = pneg %p162
    // Predicated region
    $region9: #{_lambda_.3} parent=5 // pred_check
      _
    $region10: #{_lambda_.3} parent=5 // pred_check_branch
      %165 = sbr.rel (%p162) target = $region12
    $region11: #{_lambda_.3} parent=5 // pred_region
      %s166 = ssub.s32 %s11, 1
      // Predicated region
      $region13: #{_lambda_.3} parent=11 // pred_check
        %p167 = pneg %p84
      $region14: #{_lambda_.3} parent=11 // pred_check_branch
        %169 = sbr.rel (%p167) target = $region16
      $region15: #{_lambda_.3} parent=11 // pred_region
        _
      $region16: #{_lambda_.3} parent=11 // pred_fallthru
        _
      // Predicated region
      $region17: #{_lambda_.3} parent=11 // pred_check
        %p170 = pneg %p105
      $region18: #{_lambda_.3} parent=11 // pred_check_branch
        %172 = sbr.rel (%p170) target = $region20
      $region19: #{_lambda_.3} parent=11 // pred_region
        _
      $region20: #{_lambda_.3} parent=11 // pred_fallthru
        _
      // Predicated region
      $region21: #{_lambda_.3} parent=11 // pred_check
        %p173 = pneg %p126
      $region22: #{_lambda_.3} parent=11 // pred_check_branch
        %175 = sbr.rel (%p173) target = $region24
      $region23: #{_lambda_.3} parent=11 // pred_region
        _
      $region24: #{_lambda_.3} parent=11 // pred_fallthru
        _
    $region12: #{_lambda_.3} parent=5 // pred_fallthru
      _
    %p176 = scmp.lt.s32.totalorder %s11, 2
    // Predicated region
    $region25: #{_lambda_.3} parent=5 // pred_check
      %p177 = pneg %p176
    $region26: #{_lambda_.3} parent=5 // pred_check_branch
      %179 = sbr.rel (%p177) target = $region28
    $region27: #{_lambda_.3} parent=5 // pred_region
      // Predicated region
      $region29: #{_lambda_.3} parent=27 // pred_check
        %p180 = pneg %p31
      $region30: #{_lambda_.3} parent=27 // pred_check_branch
        %182 = sbr.rel (%p180) target = $region32
      $region31: #{_lambda_.3} parent=27 // pred_region
        %p183 = scmp.lt.s32.totalorder %s11, 1
        %s184 = scalar_select %p183, %s11, 1
        %s185 = smul.addr %s184, 39
        %s186 = smul.addr %s185, 8
        %s187 = scalar_lea.vmem %s0, %s186
      $region32: #{_lambda_.3} parent=27 // pred_fallthru
        _
      // Predicated region
      $region33: #{_lambda_.3} parent=27 // pred_check
        %p188 = pneg %p57
      $region34: #{_lambda_.3} parent=27 // pred_check_branch
        %190 = sbr.rel (%p188) target = $region36
      $region35: #{_lambda_.3} parent=27 // pred_region
        %p191 = scmp.lt.s32.totalorder %s11, 1
        %s192 = scalar_select %p191, %s11, 1
        %s193 = smul.addr %s192, 37
        %s194 = smul.addr %s193, 8
        %s195 = scalar_lea.vmem %s1, %s194
      $region36: #{_lambda_.3} parent=27 // pred_fallthru
        _
    $region28: #{_lambda_.3} parent=5 // pred_fallthru
      _
    %p196 = scmp.le.s32.totalorder 1, %s11
    %p197 = scmp.lt.s32.totalorder %s11, 3
    %p198 = pnand %p196, %p197
    %p199 = pneg %p198
    // Predicated region
    $region37: #{_lambda_.3} parent=5 // pred_check
      _
    $region38: #{_lambda_.3} parent=5 // pred_check_branch
      %201 = sbr.rel (%p198) target = $region40
    $region39: #{_lambda_.3} parent=5 // pred_region
      %s202 = ssub.s32 %s11, 1
      %p203 = scmp.lt.s32.totalorder %s16, 1
      %s204 = scalar_select %p203, %s16, 1
      %s205 = smul.addr %s204, 39
      %s206 = smul.addr %s205, 8
      %s207 = scalar_lea.vmem %s0, %s206
      %p208 = pneg %p37
      %p209 = pneg %p34
      %p210 = scmp.lt.s32.totalorder %s16, 1
      %s211 = scalar_select %p210, %s16, 1
      %s212 = smul.addr %s211, 37
      %s213 = smul.addr %s212, 8
      %s214 = scalar_lea.vmem %s1, %s213
      %p215 = pneg %p63
      %p216 = pneg %p60
      %p217 = pneg %p84
      %p218 = pneg %p81
      %p219 = pneg %p105
      %p220 = pneg %p102
      %p221 = pneg %p126
      %p222 = pneg %p123
      %p223 = pneg %p152
      %p224 = pneg %p149
      %p225 = scmp.lt.s32.totalorder %s16, 1
      %s226 = scalar_select %p225, %s16, 1
      %s227 = smul.addr %s226, 37
      %s228 = smul.addr %s227, 8
      %s229 = scalar_lea.vmem %s5, %s228
      %p230 = scmp.lt.s32.totalorder %s16, 1
      %s231 = scalar_select %p230, %s16, 1
      %s232 = smul.addr %s231, 39
      %s233 = smul.addr %s232, 8
      %s234 = scalar_lea.vmem %s0, %s233
      %p235 = scmp.lt.s32.totalorder %s16, 1
      %s236 = scalar_select %p235, %s16, 1
      %s237 = smul.addr %s236, 37
      %s238 = smul.addr %s237, 8
      %s239 = scalar_lea.vmem %s1, %s238
      %p240 = scmp.lt.s32.totalorder %s16, 1
      %s241 = scalar_select %p240, %s16, 1
      %s242 = smul.addr %s241, 37
      %s243 = smul.addr %s242, 8
      %s244 = scalar_lea.vmem %s5, %s243
      %v245 = vld [vmem:[%s234] sm:$0xff]
      %v246 = vld [vmem:[%s234 + $0x8] sm:$0xff]
      %v247 = vld [vmem:[%s234 + $0x10] sm:$0xff]
      %v248 = vld [vmem:[%s234 + $0x18] sm:$0xff]
      %v249 = vld [vmem:[%s234 + $0x20] sm:$0xff]
      %v250 = vld [vmem:[%s234 + $0x28] sm:$0xff]
      %v251 = vld [vmem:[%s234 + $0x30] sm:$0xff]
      %v252 = vld [vmem:[%s234 + $0x38] sm:$0xff]
      %v253 = vld [vmem:[%s234 + $0x40] sm:$0xff]
      %v254 = vld [vmem:[%s234 + $0x48] sm:$0xff]
      %v255 = vld [vmem:[%s234 + $0x50] sm:$0xff]
      %v256 = vld [vmem:[%s234 + $0x58] sm:$0xff]
      %v257 = vld [vmem:[%s234 + $0x60] sm:$0xff]
      %v258 = vld [vmem:[%s234 + $0x68] sm:$0xff]
      %v259 = vld [vmem:[%s234 + $0x70] sm:$0xff]
      %v260 = vld [vmem:[%s234 + $0x78] sm:$0xff]
      %v261 = vld [vmem:[%s234 + $0x80] sm:$0xff]
      %v262 = vld [vmem:[%s234 + $0x88] sm:$0xff]
      %v263 = vld [vmem:[%s234 + $0x90] sm:$0xff]
      %v264 = vld [vmem:[%s234 + $0x98] sm:$0xff]
      %v265 = vld [vmem:[%s234 + $0xa0] sm:$0xff]
      %v266 = vld [vmem:[%s234 + $0xa8] sm:$0xff]
      %v267 = vld [vmem:[%s234 + $0xb0] sm:$0xff]
      %v268 = vld [vmem:[%s234 + $0xb8] sm:$0xff]
      %v269 = vld [vmem:[%s234 + $0xc0] sm:$0xff]
      %v270 = vld [vmem:[%s234 + $0xc8] sm:$0xff]
      %v271 = vld [vmem:[%s234 + $0xd0] sm:$0xff]
      %v272 = vld [vmem:[%s234 + $0xd8] sm:$0xff]
      %v273 = vld [vmem:[%s234 + $0xe0] sm:$0xff]
      %v274 = vld [vmem:[%s234 + $0xe8] sm:$0xff]
      %v275 = vld [vmem:[%s234 + $0xf0] sm:$0xff]
      %v276 = vld [vmem:[%s234 + $0xf8] sm:$0xff]
      %v277 = vld [vmem:[%s234 + $0x100] sm:$0xff]
      %v278 = vld [vmem:[%s234 + $0x108] sm:$0xff]
      %v279 = vld [vmem:[%s234 + $0x110] sm:$0xff]
      %v280 = vld [vmem:[%s234 + $0x118] sm:$0xff]
      %v281 = vld [vmem:[%s234 + $0x120] sm:$0x1]
      %v282 = vld [vmem:[%s2] sm:$0xff]
      %v283 = vld [vmem:[%s2 + $0x8] sm:$0xff]
      %v284 = vld [vmem:[%s234 + $0x1] sm:$0xff]
      %v285 = vld [vmem:[%s234 + $0x9] sm:$0xff]
      %v286 = vld [vmem:[%s234 + $0x11] sm:$0xff]
      %v287 = vld [vmem:[%s234 + $0x19] sm:$0xff]
      %v288 = vld [vmem:[%s234 + $0x21] sm:$0xff]
      %v289 = vld [vmem:[%s234 + $0x29] sm:$0xff]
      %v290 = vld [vmem:[%s234 + $0x31] sm:$0xff]
      %v291 = vld [vmem:[%s234 + $0x39] sm:$0xff]
      %v292 = vld [vmem:[%s234 + $0x41] sm:$0xff]
      %v293 = vld [vmem:[%s234 + $0x49] sm:$0xff]
      %v294 = vld [vmem:[%s234 + $0x51] sm:$0xff]
      %v295 = vld [vmem:[%s234 + $0x59] sm:$0xff]
      %v296 = vld [vmem:[%s234 + $0x61] sm:$0xff]
      %v297 = vld [vmem:[%s234 + $0x69] sm:$0xff]
      %v298 = vld [vmem:[%s234 + $0x71] sm:$0xff]
      %v299 = vld [vmem:[%s234 + $0x79] sm:$0xff]
      %v300 = vld [vmem:[%s234 + $0x81] sm:$0xff]
      %v301 = vld [vmem:[%s234 + $0x89] sm:$0xff]
      %v302 = vld [vmem:[%s234 + $0x91] sm:$0xff]
      %v303 = vld [vmem:[%s234 + $0x99] sm:$0xff]
      %v304 = vld [vmem:[%s234 + $0xa1] sm:$0xff]
      %v305 = vld [vmem:[%s234 + $0xa9] sm:$0xff]
      %v306 = vld [vmem:[%s234 + $0xb1] sm:$0xff]
      %v307 = vld [vmem:[%s234 + $0xb9] sm:$0xff]
      %v308 = vld [vmem:[%s234 + $0xc1] sm:$0xff]
      %v309 = vld [vmem:[%s234 + $0xc9] sm:$0xff]
      %v310 = vld [vmem:[%s234 + $0xd1] sm:$0xff]
      %v311 = vld [vmem:[%s234 + $0xd9] sm:$0xff]
      %v312 = vld [vmem:[%s234 + $0xe1] sm:$0xff]
      %v313 = vld [vmem:[%s234 + $0xe9] sm:$0xff]
      %v314 = vld [vmem:[%s234 + $0xf1] sm:$0xff]
      %v315 = vld [vmem:[%s234 + $0xf9] sm:$0xff]
      %v316 = vld [vmem:[%s234 + $0x101] sm:$0xff]
      %v317 = vld [vmem:[%s234 + $0x109] sm:$0xff]
      %v318 = vld [vmem:[%s234 + $0x111] sm:$0xff]
      %v319 = vld [vmem:[%s234 + $0x119] sm:$0xff]
      %v320 = vld [vmem:[%s234 + $0x121] sm:$0x1]
      %v321 = vld [vmem:[%s2 + $0x10] sm:$0xff]
      %v322 = vld [vmem:[%s2 + $0x18] sm:$0xff]
      %vm323 = vcmask 130048
      %v325 = vsel %vm323, %v284, 0
      %v328 = vsel %vm323, %v285, 0
      %v331 = vsel %vm323, %v286, 0
      %v334 = vsel %vm323, %v287, 0
      %v337 = vsel %vm323, %v288, 0
      %v340 = vsel %vm323, %v289, 0
      %v343 = vsel %vm323, %v290, 0
      %v346 = vsel %vm323, %v291, 0
      %v349 = vsel %vm323, %v292, 0
      %v352 = vsel %vm323, %v293, 0
      %v355 = vsel %vm323, %v294, 0
      %v358 = vsel %vm323, %v295, 0
      %v361 = vsel %vm323, %v296, 0
      %v364 = vsel %vm323, %v297, 0
      %v367 = vsel %vm323, %v298, 0
      %v370 = vsel %vm323, %v299, 0
      %v373 = vsel %vm323, %v300, 0
      %v376 = vsel %vm323, %v301, 0
      %v379 = vsel %vm323, %v302, 0
      %v382 = vsel %vm323, %v303, 0
      %v385 = vsel %vm323, %v304, 0
      %v388 = vsel %vm323, %v305, 0
      %v391 = vsel %vm323, %v306, 0
      %v394 = vsel %vm323, %v307, 0
      %v397 = vsel %vm323, %v308, 0
      %v400 = vsel %vm323, %v309, 0
      %v403 = vsel %vm323, %v310, 0
      %v406 = vsel %vm323, %v311, 0
      %v409 = vsel %vm323, %v312, 0
      %v412 = vsel %vm323, %v313, 0
      %v415 = vsel %vm323, %v314, 0
      %v418 = vsel %vm323, %v315, 0
      %v421 = vsel %vm323, %v316, 0
      %v424 = vsel %vm323, %v317, 0
      %v427 = vsel %vm323, %v318, 0
      %v430 = vsel %vm323, %v319, 0
      %v433 = vsel %vm323, %v320, 0
      %435 = vmatpush.msra.mxu0 0.0
      %436 = vmatpush.msra.mxu0 0.0
      %437 = vmatpush.msra.mxu0 0.0
      %438 = vmatpush.msra.mxu0 0.0
      %439 = vmatpush.msra.mxu0 0.0
      %440 = vmatpush.msra.mxu0 0.0
      %441 = vmatpush.msra.mxu0 0.0
      %442 = vmatpush.msra.mxu0 0.0
      %443 = vmatpush.msra.mxu0 0.0
      %444 = vmatpush.msra.mxu0 0.0
      %445 = vmatpush.msra.mxu0 0.0
      %446 = vmatpush.msra.mxu0 0.0
      %447 = vmatpush.msra.mxu0 0.0
      %448 = vmatpush.msra.mxu0 0.0
      %449 = vmatpush.msra.mxu0 %v322
      %450 = vmatpush.msra.mxu0 %v321
      %451 = vmatmul.f32.gmra.mxu0 %v325
      %v452 = vpop.f32.mrf.mxu0
      %v453 = vadd.f32 0.0, %v452
      %454 = vmatmul.f32.gmra.mxu0 %v328
      %v455 = vpop.f32.mrf.mxu0
      %v456 = vadd.f32 0.0, %v455
      %457 = vmatmul.f32.gmra.mxu0 %v331
      %v458 = vpop.f32.mrf.mxu0
      %v459 = vadd.f32 0.0, %v458
      %460 = vmatmul.f32.gmra.mxu0 %v334
      %v461 = vpop.f32.mrf.mxu0
      %v462 = vadd.f32 0.0, %v461
      %463 = vmatmul.f32.gmra.mxu0 %v337
      %v464 = vpop.f32.mrf.mxu0
      %v465 = vadd.f32 0.0, %v464
      %466 = vmatmul.f32.gmra.mxu0 %v340
      %v467 = vpop.f32.mrf.mxu0
      %v468 = vadd.f32 0.0, %v467
      %469 = vmatmul.f32.gmra.mxu0 %v343
      %v470 = vpop.f32.mrf.mxu0
      %v471 = vadd.f32 0.0, %v470
      %472 = vmatmul.f32.gmra.mxu0 %v346
      %v473 = vpop.f32.mrf.mxu0
      %v474 = vadd.f32 0.0, %v473
      %475 = vmatmul.f32.gmra.mxu0 %v349
      %v476 = vpop.f32.mrf.mxu0
      %v477 = vadd.f32 0.0, %v476
      %478 = vmatmul.f32.gmra.mxu0 %v352
      %v479 = vpop.f32.mrf.mxu0
      %v480 = vadd.f32 0.0, %v479
      %481 = vmatmul.f32.gmra.mxu0 %v355
      %v482 = vpop.f32.mrf.mxu0
      %v483 = vadd.f32 0.0, %v482
      %484 = vmatmul.f32.gmra.mxu0 %v358
      %v485 = vpop.f32.mrf.mxu0
      %v486 = vadd.f32 0.0, %v485
      %487 = vmatmul.f32.gmra.mxu0 %v361
      %v488 = vpop.f32.mrf.mxu0
      %v489 = vadd.f32 0.0, %v488
      %490 = vmatmul.f32.gmra.mxu0 %v364
      %v491 = vpop.f32.mrf.mxu0
      %v492 = vadd.f32 0.0, %v491
      %493 = vmatmul.f32.gmra.mxu0 %v367
      %v494 = vpop.f32.mrf.mxu0
      %v495 = vadd.f32 0.0, %v494
      %496 = vmatmul.f32.gmra.mxu0 %v370
      %v497 = vpop.f32.mrf.mxu0
      %v498 = vadd.f32 0.0, %v497
      %499 = vmatmul.f32.gmra.mxu0 %v373
      %v500 = vpop.f32.mrf.mxu0
      %v501 = vadd.f32 0.0, %v500
      %502 = vmatmul.f32.gmra.mxu0 %v376
      %v503 = vpop.f32.mrf.mxu0
      %v504 = vadd.f32 0.0, %v503
      %505 = vmatmul.f32.gmra.mxu0 %v379
      %v506 = vpop.f32.mrf.mxu0
      %v507 = vadd.f32 0.0, %v506
      %508 = vmatmul.f32.gmra.mxu0 %v382
      %v509 = vpop.f32.mrf.mxu0
      %v510 = vadd.f32 0.0, %v509
      %511 = vmatmul.f32.gmra.mxu0 %v385
      %v512 = vpop.f32.mrf.mxu0
      %v513 = vadd.f32 0.0, %v512
      %514 = vmatmul.f32.gmra.mxu0 %v388
      %v515 = vpop.f32.mrf.mxu0
      %v516 = vadd.f32 0.0, %v515
      %517 = vmatmul.f32.gmra.mxu0 %v391
      %v518 = vpop.f32.mrf.mxu0
      %v519 = vadd.f32 0.0, %v518
      %520 = vmatmul.f32.gmra.mxu0 %v394
      %v521 = vpop.f32.mrf.mxu0
      %v522 = vadd.f32 0.0, %v521
      %523 = vmatmul.f32.gmra.mxu0 %v397
      %v524 = vpop.f32.mrf.mxu0
      %v525 = vadd.f32 0.0, %v524
      %526 = vmatmul.f32.gmra.mxu0 %v400
      %v527 = vpop.f32.mrf.mxu0
      %v528 = vadd.f32 0.0, %v527
      %529 = vmatmul.f32.gmra.mxu0 %v403
      %v530 = vpop.f32.mrf.mxu0
      %v531 = vadd.f32 0.0, %v530
      %532 = vmatmul.f32.gmra.mxu0 %v406
      %v533 = vpop.f32.mrf.mxu0
      %v534 = vadd.f32 0.0, %v533
      %535 = vmatmul.f32.gmra.mxu0 %v409
      %v536 = vpop.f32.mrf.mxu0
      %v537 = vadd.f32 0.0, %v536
      %538 = vmatmul.f32.gmra.mxu0 %v412
      %v539 = vpop.f32.mrf.mxu0
      %v540 = vadd.f32 0.0, %v539
      %541 = vmatmul.f32.gmra.mxu0 %v415
      %v542 = vpop.f32.mrf.mxu0
      %v543 = vadd.f32 0.0, %v542
      %544 = vmatmul.f32.gmra.mxu0 %v418
      %v545 = vpop.f32.mrf.mxu0
      %v546 = vadd.f32 0.0, %v545
      %547 = vmatmul.f32.gmra.mxu0 %v421
      %v548 = vpop.f32.mrf.mxu0
      %v549 = vadd.f32 0.0, %v548
      %550 = vmatmul.f32.gmra.mxu0 %v424
      %v551 = vpop.f32.mrf.mxu0
      %v552 = vadd.f32 0.0, %v551
      %553 = vmatmul.f32.gmra.mxu0 %v427
      %v554 = vpop.f32.mrf.mxu0
      %v555 = vadd.f32 0.0, %v554
      %556 = vmatmul.f32.gmra.mxu0 %v430
      %v557 = vpop.f32.mrf.mxu0
      %v558 = vadd.f32 0.0, %v557
      %559 = vmatmul.f32.gmra.mxu0 %v433
      %v560 = vpop.f32.mrf.mxu0
      %v561 = vadd.f32 0.0, %v560
      %562 = vdwg.mxu0
      %v564 = vsel %vm323, %v245, 0
      %v567 = vsel %vm323, %v246, 0
      %v570 = vsel %vm323, %v247, 0
      %v573 = vsel %vm323, %v248, 0
      %v576 = vsel %vm323, %v249, 0
      %v579 = vsel %vm323, %v250, 0
      %v582 = vsel %vm323, %v251, 0
      %v585 = vsel %vm323, %v252, 0
      %v588 = vsel %vm323, %v253, 0
      %v591 = vsel %vm323, %v254, 0
      %v594 = vsel %vm323, %v255, 0
      %v597 = vsel %vm323, %v256, 0
      %v600 = vsel %vm323, %v257, 0
      %v603 = vsel %vm323, %v258, 0
      %v606 = vsel %vm323, %v259, 0
      %v609 = vsel %vm323, %v260, 0
      %v612 = vsel %vm323, %v261, 0
      %v615 = vsel %vm323, %v262, 0
      %v618 = vsel %vm323, %v263, 0
      %v621 = vsel %vm323, %v264, 0
      %v624 = vsel %vm323, %v265, 0
      %v627 = vsel %vm323, %v266, 0
      %v630 = vsel %vm323, %v267, 0
      %v633 = vsel %vm323, %v268, 0
      %v636 = vsel %vm323, %v269, 0
      %v639 = vsel %vm323, %v270, 0
      %v642 = vsel %vm323, %v271, 0
      %v645 = vsel %vm323, %v272, 0
      %v648 = vsel %vm323, %v273, 0
      %v651 = vsel %vm323, %v274, 0
      %v654 = vsel %vm323, %v275, 0
      %v657 = vsel %vm323, %v276, 0
      %v660 = vsel %vm323, %v277, 0
      %v663 = vsel %vm323, %v278, 0
      %v666 = vsel %vm323, %v279, 0
      %v669 = vsel %vm323, %v280, 0
      %v672 = vsel %vm323, %v281, 0
      %674 = vmatpush.msra.mxu0 0.0
      %675 = vmatpush.msra.mxu0 0.0
      %676 = vmatpush.msra.mxu0 0.0
      %677 = vmatpush.msra.mxu0 0.0
      %678 = vmatpush.msra.mxu0 0.0
      %679 = vmatpush.msra.mxu0 0.0
      %680 = vmatpush.msra.mxu0 0.0
      %681 = vmatpush.msra.mxu0 0.0
      %682 = vmatpush.msra.mxu0 0.0
      %683 = vmatpush.msra.mxu0 0.0
      %684 = vmatpush.msra.mxu0 0.0
      %685 = vmatpush.msra.mxu0 0.0
      %686 = vmatpush.msra.mxu0 0.0
      %687 = vmatpush.msra.mxu0 0.0
      %688 = vmatpush.msra.mxu0 %v283
      %689 = vmatpush.msra.mxu0 %v282
      %690 = vmatmul.f32.gmra.mxu0 %v564
      %v691 = vpop.f32.mrf.mxu0
      %v692 = vadd.f32 %v453, %v691
      %693 = vmatmul.f32.gmra.mxu0 %v567
      %v694 = vpop.f32.mrf.mxu0
      %v695 = vadd.f32 %v456, %v694
      %696 = vmatmul.f32.gmra.mxu0 %v570
      %v697 = vpop.f32.mrf.mxu0
      %v698 = vadd.f32 %v459, %v697
      %699 = vmatmul.f32.gmra.mxu0 %v573
      %v700 = vpop.f32.mrf.mxu0
      %v701 = vadd.f32 %v462, %v700
      %702 = vmatmul.f32.gmra.mxu0 %v576
      %v703 = vpop.f32.mrf.mxu0
      %v704 = vadd.f32 %v465, %v703
      %705 = vmatmul.f32.gmra.mxu0 %v579
      %v706 = vpop.f32.mrf.mxu0
      %v707 = vadd.f32 %v468, %v706
      %708 = vmatmul.f32.gmra.mxu0 %v582
      %v709 = vpop.f32.mrf.mxu0
      %v710 = vadd.f32 %v471, %v709
      %711 = vmatmul.f32.gmra.mxu0 %v585
      %v712 = vpop.f32.mrf.mxu0
      %v713 = vadd.f32 %v474, %v712
      %714 = vmatmul.f32.gmra.mxu0 %v588
      %v715 = vpop.f32.mrf.mxu0
      %v716 = vadd.f32 %v477, %v715
      %717 = vmatmul.f32.gmra.mxu0 %v591
      %v718 = vpop.f32.mrf.mxu0
      %v719 = vadd.f32 %v480, %v718
      %720 = vmatmul.f32.gmra.mxu0 %v594
      %v721 = vpop.f32.mrf.mxu0
      %v722 = vadd.f32 %v483, %v721
      %723 = vmatmul.f32.gmra.mxu0 %v597
      %v724 = vpop.f32.mrf.mxu0
      %v725 = vadd.f32 %v486, %v724
      %726 = vmatmul.f32.gmra.mxu0 %v600
      %v727 = vpop.f32.mrf.mxu0
      %v728 = vadd.f32 %v489, %v727
      %729 = vmatmul.f32.gmra.mxu0 %v603
      %v730 = vpop.f32.mrf.mxu0
      %v731 = vadd.f32 %v492, %v730
      %732 = vmatmul.f32.gmra.mxu0 %v606
      %v733 = vpop.f32.mrf.mxu0
      %v734 = vadd.f32 %v495, %v733
      %735 = vmatmul.f32.gmra.mxu0 %v609
      %v736 = vpop.f32.mrf.mxu0
      %v737 = vadd.f32 %v498, %v736
      %738 = vmatmul.f32.gmra.mxu0 %v612
      %v739 = vpop.f32.mrf.mxu0
      %v740 = vadd.f32 %v501, %v739
      %741 = vmatmul.f32.gmra.mxu0 %v615
      %v742 = vpop.f32.mrf.mxu0
      %v743 = vadd.f32 %v504, %v742
      %744 = vmatmul.f32.gmra.mxu0 %v618
      %v745 = vpop.f32.mrf.mxu0
      %v746 = vadd.f32 %v507, %v745
      %747 = vmatmul.f32.gmra.mxu0 %v621
      %v748 = vpop.f32.mrf.mxu0
      %v749 = vadd.f32 %v510, %v748
      %750 = vmatmul.f32.gmra.mxu0 %v624
      %v751 = vpop.f32.mrf.mxu0
      %v752 = vadd.f32 %v513, %v751
      %753 = vmatmul.f32.gmra.mxu0 %v627
      %v754 = vpop.f32.mrf.mxu0
      %v755 = vadd.f32 %v516, %v754
      %756 = vmatmul.f32.gmra.mxu0 %v630
      %v757 = vpop.f32.mrf.mxu0
      %v758 = vadd.f32 %v519, %v757
      %759 = vmatmul.f32.gmra.mxu0 %v633
      %v760 = vpop.f32.mrf.mxu0
      %v761 = vadd.f32 %v522, %v760
      %762 = vmatmul.f32.gmra.mxu0 %v636
      %v763 = vpop.f32.mrf.mxu0
      %v764 = vadd.f32 %v525, %v763
      %765 = vmatmul.f32.gmra.mxu0 %v639
      %v766 = vpop.f32.mrf.mxu0
      %v767 = vadd.f32 %v528, %v766
      %768 = vmatmul.f32.gmra.mxu0 %v642
      %v769 = vpop.f32.mrf.mxu0
      %v770 = vadd.f32 %v531, %v769
      %771 = vmatmul.f32.gmra.mxu0 %v645
      %v772 = vpop.f32.mrf.mxu0
      %v773 = vadd.f32 %v534, %v772
      %774 = vmatmul.f32.gmra.mxu0 %v648
      %v775 = vpop.f32.mrf.mxu0
      %v776 = vadd.f32 %v537, %v775
      %777 = vmatmul.f32.gmra.mxu0 %v651
      %v778 = vpop.f32.mrf.mxu0
      %v779 = vadd.f32 %v540, %v778
      %780 = vmatmul.f32.gmra.mxu0 %v654
      %v781 = vpop.f32.mrf.mxu0
      %v782 = vadd.f32 %v543, %v781
      %783 = vmatmul.f32.gmra.mxu0 %v657
      %v784 = vpop.f32.mrf.mxu0
      %v785 = vadd.f32 %v546, %v784
      %786 = vmatmul.f32.gmra.mxu0 %v660
      %v787 = vpop.f32.mrf.mxu0
      %v788 = vadd.f32 %v549, %v787
      %789 = vmatmul.f32.gmra.mxu0 %v663
      %v790 = vpop.f32.mrf.mxu0
      %v791 = vadd.f32 %v552, %v790
      %792 = vmatmul.f32.gmra.mxu0 %v666
      %v793 = vpop.f32.mrf.mxu0
      %v794 = vadd.f32 %v555, %v793
      %795 = vmatmul.f32.gmra.mxu0 %v669
      %v796 = vpop.f32.mrf.mxu0
      %v797 = vadd.f32 %v558, %v796
      %798 = vmatmul.f32.gmra.mxu0 %v672
      %v799 = vpop.f32.mrf.mxu0
      %v800 = vadd.f32 %v561, %v799
      %801 = vdwg.mxu0
      %v802 = vld [vmem:[%s234 + $0x11] sm:$0xff]
      %v803 = vld [vmem:[%s234 + $0x19] sm:$0xff]
      %v804 = vld [vmem:[%s234 + $0x21] sm:$0xff]
      %v805 = vld [vmem:[%s234 + $0x29] sm:$0xff]
      %v806 = vld [vmem:[%s234 + $0x31] sm:$0xff]
      %v807 = vld [vmem:[%s234 + $0x39] sm:$0xff]
      %v808 = vld [vmem:[%s234 + $0x41] sm:$0xff]
      %v809 = vld [vmem:[%s234 + $0x49] sm:$0xff]
      %v810 = vld [vmem:[%s234 + $0x51] sm:$0xff]
      %v811 = vld [vmem:[%s234 + $0x59] sm:$0xff]
      %v812 = vld [vmem:[%s234 + $0x61] sm:$0xff]
      %v813 = vld [vmem:[%s234 + $0x69] sm:$0xff]
      %v814 = vld [vmem:[%s234 + $0x71] sm:$0xff]
      %v815 = vld [vmem:[%s234 + $0x79] sm:$0xff]
      %v816 = vld [vmem:[%s234 + $0x81] sm:$0xff]
      %v817 = vld [vmem:[%s234 + $0x89] sm:$0xff]
      %v818 = vld [vmem:[%s234 + $0x91] sm:$0xff]
      %v819 = vld [vmem:[%s234 + $0x99] sm:$0xff]
      %v820 = vld [vmem:[%s234 + $0xa1] sm:$0xff]
      %v821 = vld [vmem:[%s234 + $0xa9] sm:$0xff]
      %v822 = vld [vmem:[%s234 + $0xb1] sm:$0xff]
      %v823 = vld [vmem:[%s234 + $0xb9] sm:$0xff]
      %v824 = vld [vmem:[%s234 + $0xc1] sm:$0xff]
      %v825 = vld [vmem:[%s234 + $0xc9] sm:$0xff]
      %v826 = vld [vmem:[%s234 + $0xd1] sm:$0xff]
      %v827 = vld [vmem:[%s234 + $0xd9] sm:$0xff]
      %v828 = vld [vmem:[%s234 + $0xe1] sm:$0xff]
      %v829 = vld [vmem:[%s234 + $0xe9] sm:$0xff]
      %v830 = vld [vmem:[%s234 + $0xf1] sm:$0xff]
      %v831 = vld [vmem:[%s234 + $0xf9] sm:$0xff]
      %v832 = vld [vmem:[%s234 + $0x101] sm:$0xff]
      %v833 = vld [vmem:[%s234 + $0x109] sm:$0xff]
      %v834 = vld [vmem:[%s234 + $0x111] sm:$0xff]
      %v835 = vld [vmem:[%s234 + $0x119] sm:$0xff]
      %v836 = vld [vmem:[%s234 + $0x121] sm:$0xff]
      %v837 = vld [vmem:[%s234 + $0x129] sm:$0xff]
      %v838 = vld [vmem:[%s234 + $0x131] sm:$0x1]
      %v839 = vld [vmem:[%s2 + $0x20] sm:$0xff]
      %v840 = vld [vmem:[%s2 + $0x28] sm:$0xff]
      %v842 = vsel %vm323, %v802, 0
      %v845 = vsel %vm323, %v803, 0
      %v848 = vsel %vm323, %v804, 0
      %v851 = vsel %vm323, %v805, 0
      %v854 = vsel %vm323, %v806, 0
      %v857 = vsel %vm323, %v807, 0
      %v860 = vsel %vm323, %v808, 0
      %v863 = vsel %vm323, %v809, 0
      %v866 = vsel %vm323, %v810, 0
      %v869 = vsel %vm323, %v811, 0
      %v872 = vsel %vm323, %v812, 0
      %v875 = vsel %vm323, %v813, 0
      %v878 = vsel %vm323, %v814, 0
      %v881 = vsel %vm323, %v815, 0
      %v884 = vsel %vm323, %v816, 0
      %v887 = vsel %vm323, %v817, 0
      %v890 = vsel %vm323, %v818, 0
      %v893 = vsel %vm323, %v819, 0
      %v896 = vsel %vm323, %v820, 0
      %v899 = vsel %vm323, %v821, 0
      %v902 = vsel %vm323, %v822, 0
      %v905 = vsel %vm323, %v823, 0
      %v908 = vsel %vm323, %v824, 0
      %v911 = vsel %vm323, %v825, 0
      %v914 = vsel %vm323, %v826, 0
      %v917 = vsel %vm323, %v827, 0
      %v920 = vsel %vm323, %v828, 0
      %v923 = vsel %vm323, %v829, 0
      %v926 = vsel %vm323, %v830, 0
      %v929 = vsel %vm323, %v831, 0
      %v932 = vsel %vm323, %v832, 0
      %v935 = vsel %vm323, %v833, 0
      %v938 = vsel %vm323, %v834, 0
      %v941 = vsel %vm323, %v835, 0
      %v944 = vsel %vm323, %v836, 0
      %v947 = vsel %vm323, %v837, 0
      %v950 = vsel %vm323, %v838, 0
      %952 = vmatpush.msra.mxu0 0.0
      %953 = vmatpush.msra.mxu0 0.0
      %954 = vmatpush.msra.mxu0 0.0
      %955 = vmatpush.msra.mxu0 0.0
      %956 = vmatpush.msra.mxu0 0.0
      %957 = vmatpush.msra.mxu0 0.0
      %958 = vmatpush.msra.mxu0 0.0
      %959 = vmatpush.msra.mxu0 0.0
      %960 = vmatpush.msra.mxu0 0.0
      %961 = vmatpush.msra.mxu0 0.0
      %962 = vmatpush.msra.mxu0 0.0
      %963 = vmatpush.msra.mxu0 0.0
      %964 = vmatpush.msra.mxu0 0.0
      %965 = vmatpush.msra.mxu0 0.0
      %966 = vmatpush.msra.mxu0 %v840
      %967 = vmatpush.msra.mxu0 %v839
      %968 = vmatmul.f32.gmra.mxu0 %v842
      %v969 = vpop.f32.mrf.mxu0
      %v970 = vadd.f32 0.0, %v969
      %971 = vmatmul.f32.gmra.mxu0 %v845
      %v972 = vpop.f32.mrf.mxu0
      %v973 = vadd.f32 0.0, %v972
      %974 = vmatmul.f32.gmra.mxu0 %v848
      %v975 = vpop.f32.mrf.mxu0
      %v976 = vadd.f32 0.0, %v975
      %977 = vmatmul.f32.gmra.mxu0 %v851
      %v978 = vpop.f32.mrf.mxu0
      %v979 = vadd.f32 0.0, %v978
      %980 = vmatmul.f32.gmra.mxu0 %v854
      %v981 = vpop.f32.mrf.mxu0
      %v982 = vadd.f32 0.0, %v981
      %983 = vmatmul.f32.gmra.mxu0 %v857
      %v984 = vpop.f32.mrf.mxu0
      %v985 = vadd.f32 0.0, %v984
      %986 = vmatmul.f32.gmra.mxu0 %v860
      %v987 = vpop.f32.mrf.mxu0
      %v988 = vadd.f32 0.0, %v987
      %989 = vmatmul.f32.gmra.mxu0 %v863
      %v990 = vpop.f32.mrf.mxu0
      %v991 = vadd.f32 0.0, %v990
      %992 = vmatmul.f32.gmra.mxu0 %v866
      %v993 = vpop.f32.mrf.mxu0
      %v994 = vadd.f32 0.0, %v993
      %995 = vmatmul.f32.gmra.mxu0 %v869
      %v996 = vpop.f32.mrf.mxu0
      %v997 = vadd.f32 0.0, %v996
      %998 = vmatmul.f32.gmra.mxu0 %v872
      %v999 = vpop.f32.mrf.mxu0
      %v1000 = vadd.f32 0.0, %v999
      %1001 = vmatmul.f32.gmra.mxu0 %v875
      %v1002 = vpop.f32.mrf.mxu0
      %v1003 = vadd.f32 0.0, %v1002
      %1004 = vmatmul.f32.gmra.mxu0 %v878
      %v1005 = vpop.f32.mrf.mxu0
      %v1006 = vadd.f32 0.0, %v1005
      %1007 = vmatmul.f32.gmra.mxu0 %v881
      %v1008 = vpop.f32.mrf.mxu0
      %v1009 = vadd.f32 0.0, %v1008
      %1010 = vmatmul.f32.gmra.mxu0 %v884
      %v1011 = vpop.f32.mrf.mxu0
      %v1012 = vadd.f32 0.0, %v1011
      %1013 = vmatmul.f32.gmra.mxu0 %v887
      %v1014 = vpop.f32.mrf.mxu0
      %v1015 = vadd.f32 0.0, %v1014
      %1016 = vmatmul.f32.gmra.mxu0 %v890
      %v1017 = vpop.f32.mrf.mxu0
      %v1018 = vadd.f32 0.0, %v1017
      %1019 = vmatmul.f32.gmra.mxu0 %v893
      %v1020 = vpop.f32.mrf.mxu0
      %v1021 = vadd.f32 0.0, %v1020
      %1022 = vmatmul.f32.gmra.mxu0 %v896
      %v1023 = vpop.f32.mrf.mxu0
      %v1024 = vadd.f32 0.0, %v1023
      %1025 = vmatmul.f32.gmra.mxu0 %v899
      %v1026 = vpop.f32.mrf.mxu0
      %v1027 = vadd.f32 0.0, %v1026
      %1028 = vmatmul.f32.gmra.mxu0 %v902
      %v1029 = vpop.f32.mrf.mxu0
      %v1030 = vadd.f32 0.0, %v1029
      %1031 = vmatmul.f32.gmra.mxu0 %v905
      %v1032 = vpop.f32.mrf.mxu0
      %v1033 = vadd.f32 0.0, %v1032
      %1034 = vmatmul.f32.gmra.mxu0 %v908
      %v1035 = vpop.f32.mrf.mxu0
      %v1036 = vadd.f32 0.0, %v1035
      %1037 = vmatmul.f32.gmra.mxu0 %v911
      %v1038 = vpop.f32.mrf.mxu0
      %v1039 = vadd.f32 0.0, %v1038
      %1040 = vmatmul.f32.gmra.mxu0 %v914
      %v1041 = vpop.f32.mrf.mxu0
      %v1042 = vadd.f32 0.0, %v1041
      %1043 = vmatmul.f32.gmra.mxu0 %v917
      %v1044 = vpop.f32.mrf.mxu0
      %v1045 = vadd.f32 0.0, %v1044
      %1046 = vmatmul.f32.gmra.mxu0 %v920
      %v1047 = vpop.f32.mrf.mxu0
      %v1048 = vadd.f32 0.0, %v1047
      %1049 = vmatmul.f32.gmra.mxu0 %v923
      %v1050 = vpop.f32.mrf.mxu0
      %v1051 = vadd.f32 0.0, %v1050
      %1052 = vmatmul.f32.gmra.mxu0 %v926
      %v1053 = vpop.f32.mrf.mxu0
      %v1054 = vadd.f32 0.0, %v1053
      %1055 = vmatmul.f32.gmra.mxu0 %v929
      %v1056 = vpop.f32.mrf.mxu0
      %v1057 = vadd.f32 0.0, %v1056
      %1058 = vmatmul.f32.gmra.mxu0 %v932
      %v1059 = vpop.f32.mrf.mxu0
      %v1060 = vadd.f32 0.0, %v1059
      %1061 = vmatmul.f32.gmra.mxu0 %v935
      %v1062 = vpop.f32.mrf.mxu0
      %v1063 = vadd.f32 0.0, %v1062
      %1064 = vmatmul.f32.gmra.mxu0 %v938
      %v1065 = vpop.f32.mrf.mxu0
      %v1066 = vadd.f32 0.0, %v1065
      %1067 = vmatmul.f32.gmra.mxu0 %v941
      %v1068 = vpop.f32.mrf.mxu0
      %v1069 = vadd.f32 0.0, %v1068
      %1070 = vmatmul.f32.gmra.mxu0 %v944
      %v1071 = vpop.f32.mrf.mxu0
      %v1072 = vadd.f32 0.0, %v1071
      %1073 = vmatmul.f32.gmra.mxu0 %v947
      %v1074 = vpop.f32.mrf.mxu0
      %v1075 = vadd.f32 0.0, %v1074
      %1076 = vmatmul.f32.gmra.mxu0 %v950
      %v1077 = vpop.f32.mrf.mxu0
      %v1078 = vadd.f32 0.0, %v1077
      %1079 = vdwg.mxu0
      %v1080 = vadd.f32 %v692, %v970
      %v1081 = vadd.f32 %v695, %v973
      %v1082 = vadd.f32 %v698, %v976
      %v1083 = vadd.f32 %v701, %v979
      %v1084 = vadd.f32 %v704, %v982
      %v1085 = vadd.f32 %v707, %v985
      %v1086 = vadd.f32 %v710, %v988
      %v1087 = vadd.f32 %v713, %v991
      %v1088 = vadd.f32 %v716, %v994
      %v1089 = vadd.f32 %v719, %v997
      %v1090 = vadd.f32 %v722, %v1000
      %v1091 = vadd.f32 %v725, %v1003
      %v1092 = vadd.f32 %v728, %v1006
      %v1093 = vadd.f32 %v731, %v1009
      %v1094 = vadd.f32 %v734, %v1012
      %v1095 = vadd.f32 %v737, %v1015
      %v1096 = vadd.f32 %v740, %v1018
      %v1097 = vadd.f32 %v743, %v1021
      %v1098 = vadd.f32 %v746, %v1024
      %v1099 = vadd.f32 %v749, %v1027
      %v1100 = vadd.f32 %v752, %v1030
      %v1101 = vadd.f32 %v755, %v1033
      %v1102 = vadd.f32 %v758, %v1036
      %v1103 = vadd.f32 %v761, %v1039
      %v1104 = vadd.f32 %v764, %v1042
      %v1105 = vadd.f32 %v767, %v1045
      %v1106 = vadd.f32 %v770, %v1048
      %v1107 = vadd.f32 %v773, %v1051
      %v1108 = vadd.f32 %v776, %v1054
      %v1109 = vadd.f32 %v779, %v1057
      %v1110 = vadd.f32 %v782, %v1060
      %v1111 = vadd.f32 %v785, %v1063
      %v1112 = vadd.f32 %v788, %v1066
      %v1113 = vadd.f32 %v791, %v1069
      %v1114 = vadd.f32 %v794, %v1072
      %v1115 = vadd.f32 %v797, %v1075
      %v1116 = vadd.f32 %v800, %v1078
      %v1117 = vld [vmem:[%s234 + $0x12] sm:$0xff]
      %v1118 = vld [vmem:[%s234 + $0x1a] sm:$0xff]
      %v1119 = vld [vmem:[%s234 + $0x22] sm:$0xff]
      %v1120 = vld [vmem:[%s234 + $0x2a] sm:$0xff]
      %v1121 = vld [vmem:[%s234 + $0x32] sm:$0xff]
      %v1122 = vld [vmem:[%s234 + $0x3a] sm:$0xff]
      %v1123 = vld [vmem:[%s234 + $0x42] sm:$0xff]
      %v1124 = vld [vmem:[%s234 + $0x4a] sm:$0xff]
      %v1125 = vld [vmem:[%s234 + $0x52] sm:$0xff]
      %v1126 = vld [vmem:[%s234 + $0x5a] sm:$0xff]
      %v1127 = vld [vmem:[%s234 + $0x62] sm:$0xff]
      %v1128 = vld [vmem:[%s234 + $0x6a] sm:$0xff]
      %v1129 = vld [vmem:[%s234 + $0x72] sm:$0xff]
      %v1130 = vld [vmem:[%s234 + $0x7a] sm:$0xff]
      %v1131 = vld [vmem:[%s234 + $0x82] sm:$0xff]
      %v1132 = vld [vmem:[%s234 + $0x8a] sm:$0xff]
      %v1133 = vld [vmem:[%s234 + $0x92] sm:$0xff]
      %v1134 = vld [vmem:[%s234 + $0x9a] sm:$0xff]
      %v1135 = vld [vmem:[%s234 + $0xa2] sm:$0xff]
      %v1136 = vld [vmem:[%s234 + $0xaa] sm:$0xff]
      %v1137 = vld [vmem:[%s234 + $0xb2] sm:$0xff]
      %v1138 = vld [vmem:[%s234 + $0xba] sm:$0xff]
      %v1139 = vld [vmem:[%s234 + $0xc2] sm:$0xff]
      %v1140 = vld [vmem:[%s234 + $0xca] sm:$0xff]
      %v1141 = vld [vmem:[%s234 + $0xd2] sm:$0xff]
      %v1142 = vld [vmem:[%s234 + $0xda] sm:$0xff]
      %v1143 = vld [vmem:[%s234 + $0xe2] sm:$0xff]
      %v1144 = vld [vmem:[%s234 + $0xea] sm:$0xff]
      %v1145 = vld [vmem:[%s234 + $0xf2] sm:$0xff]
      %v1146 = vld [vmem:[%s234 + $0xfa] sm:$0xff]
      %v1147 = vld [vmem:[%s234 + $0x102] sm:$0xff]
      %v1148 = vld [vmem:[%s234 + $0x10a] sm:$0xff]
      %v1149 = vld [vmem:[%s234 + $0x112] sm:$0xff]
      %v1150 = vld [vmem:[%s234 + $0x11a] sm:$0xff]
      %v1151 = vld [vmem:[%s234 + $0x122] sm:$0xff]
      %v1152 = vld [vmem:[%s234 + $0x12a] sm:$0xff]
      %v1153 = vld [vmem:[%s234 + $0x132] sm:$0x1]
      %v1154 = vld [vmem:[%s2 + $0x30] sm:$0xff]
      %v1155 = vld [vmem:[%s2 + $0x38] sm:$0xff]
      %v1157 = vsel %vm323, %v1117, 0
      %v1160 = vsel %vm323, %v1118, 0
      %v1163 = vsel %vm323, %v1119, 0
      %v1166 = vsel %vm323, %v1120, 0
      %v1169 = vsel %vm323, %v1121, 0
      %v1172 = vsel %vm323, %v1122, 0
      %v1175 = vsel %vm323, %v1123, 0
      %v1178 = vsel %vm323, %v1124, 0
      %v1181 = vsel %vm323, %v1125, 0
      %v1184 = vsel %vm323, %v1126, 0
      %v1187 = vsel %vm323, %v1127, 0
      %v1190 = vsel %vm323, %v1128, 0
      %v1193 = vsel %vm323, %v1129, 0
      %v1196 = vsel %vm323, %v1130, 0
      %v1199 = vsel %vm323, %v1131, 0
      %v1202 = vsel %vm323, %v1132, 0
      %v1205 = vsel %vm323, %v1133, 0
      %v1208 = vsel %vm323, %v1134, 0
      %v1211 = vsel %vm323, %v1135, 0
      %v1214 = vsel %vm323, %v1136, 0
      %v1217 = vsel %vm323, %v1137, 0
      %v1220 = vsel %vm323, %v1138, 0
      %v1223 = vsel %vm323, %v1139, 0
      %v1226 = vsel %vm323, %v1140, 0
      %v1229 = vsel %vm323, %v1141, 0
      %v1232 = vsel %vm323, %v1142, 0
      %v1235 = vsel %vm323, %v1143, 0
      %v1238 = vsel %vm323, %v1144, 0
      %v1241 = vsel %vm323, %v1145, 0
      %v1244 = vsel %vm323, %v1146, 0
      %v1247 = vsel %vm323, %v1147, 0
      %v1250 = vsel %vm323, %v1148, 0
      %v1253 = vsel %vm323, %v1149, 0
      %v1256 = vsel %vm323, %v1150, 0
      %v1259 = vsel %vm323, %v1151, 0
      %v1262 = vsel %vm323, %v1152, 0
      %v1265 = vsel %vm323, %v1153, 0
      %1267 = vmatpush.msra.mxu0 0.0
      %1268 = vmatpush.msra.mxu0 0.0
      %1269 = vmatpush.msra.mxu0 0.0
      %1270 = vmatpush.msra.mxu0 0.0
      %1271 = vmatpush.msra.mxu0 0.0
      %1272 = vmatpush.msra.mxu0 0.0
      %1273 = vmatpush.msra.mxu0 0.0
      %1274 = vmatpush.msra.mxu0 0.0
      %1275 = vmatpush.msra.mxu0 0.0
      %1276 = vmatpush.msra.mxu0 0.0
      %1277 = vmatpush.msra.mxu0 0.0
      %1278 = vmatpush.msra.mxu0 0.0
      %1279 = vmatpush.msra.mxu0 0.0
      %1280 = vmatpush.msra.mxu0 0.0
      %1281 = vmatpush.msra.mxu0 %v1155
      %1282 = vmatpush.msra.mxu0 %v1154
      %1283 = vmatmul.f32.gmra.mxu0 %v1157
      %v1284 = vpop.f32.mrf.mxu0
      %v1285 = vadd.f32 0.0, %v1284
      %1286 = vmatmul.f32.gmra.mxu0 %v1160
      %v1287 = vpop.f32.mrf.mxu0
      %v1288 = vadd.f32 0.0, %v1287
      %1289 = vmatmul.f32.gmra.mxu0 %v1163
      %v1290 = vpop.f32.mrf.mxu0
      %v1291 = vadd.f32 0.0, %v1290
      %1292 = vmatmul.f32.gmra.mxu0 %v1166
      %v1293 = vpop.f32.mrf.mxu0
      %v1294 = vadd.f32 0.0, %v1293
      %1295 = vmatmul.f32.gmra.mxu0 %v1169
      %v1296 = vpop.f32.mrf.mxu0
      %v1297 = vadd.f32 0.0, %v1296
      %1298 = vmatmul.f32.gmra.mxu0 %v1172
      %v1299 = vpop.f32.mrf.mxu0
      %v1300 = vadd.f32 0.0, %v1299
      %1301 = vmatmul.f32.gmra.mxu0 %v1175
      %v1302 = vpop.f32.mrf.mxu0
      %v1303 = vadd.f32 0.0, %v1302
      %1304 = vmatmul.f32.gmra.mxu0 %v1178
      %v1305 = vpop.f32.mrf.mxu0
      %v1306 = vadd.f32 0.0, %v1305
      %1307 = vmatmul.f32.gmra.mxu0 %v1181
      %v1308 = vpop.f32.mrf.mxu0
      %v1309 = vadd.f32 0.0, %v1308
      %1310 = vmatmul.f32.gmra.mxu0 %v1184
      %v1311 = vpop.f32.mrf.mxu0
      %v1312 = vadd.f32 0.0, %v1311
      %1313 = vmatmul.f32.gmra.mxu0 %v1187
      %v1314 = vpop.f32.mrf.mxu0
      %v1315 = vadd.f32 0.0, %v1314
      %1316 = vmatmul.f32.gmra.mxu0 %v1190
      %v1317 = vpop.f32.mrf.mxu0
      %v1318 = vadd.f32 0.0, %v1317
      %1319 = vmatmul.f32.gmra.mxu0 %v1193
      %v1320 = vpop.f32.mrf.mxu0
      %v1321 = vadd.f32 0.0, %v1320
      %1322 = vmatmul.f32.gmra.mxu0 %v1196
      %v1323 = vpop.f32.mrf.mxu0
      %v1324 = vadd.f32 0.0, %v1323
      %1325 = vmatmul.f32.gmra.mxu0 %v1199
      %v1326 = vpop.f32.mrf.mxu0
      %v1327 = vadd.f32 0.0, %v1326
      %1328 = vmatmul.f32.gmra.mxu0 %v1202
      %v1329 = vpop.f32.mrf.mxu0
      %v1330 = vadd.f32 0.0, %v1329
      %1331 = vmatmul.f32.gmra.mxu0 %v1205
      %v1332 = vpop.f32.mrf.mxu0
      %v1333 = vadd.f32 0.0, %v1332
      %1334 = vmatmul.f32.gmra.mxu0 %v1208
      %v1335 = vpop.f32.mrf.mxu0
      %v1336 = vadd.f32 0.0, %v1335
      %1337 = vmatmul.f32.gmra.mxu0 %v1211
      %v1338 = vpop.f32.mrf.mxu0
      %v1339 = vadd.f32 0.0, %v1338
      %1340 = vmatmul.f32.gmra.mxu0 %v1214
      %v1341 = vpop.f32.mrf.mxu0
      %v1342 = vadd.f32 0.0, %v1341
      %1343 = vmatmul.f32.gmra.mxu0 %v1217
      %v1344 = vpop.f32.mrf.mxu0
      %v1345 = vadd.f32 0.0, %v1344
      %1346 = vmatmul.f32.gmra.mxu0 %v1220
      %v1347 = vpop.f32.mrf.mxu0
      %v1348 = vadd.f32 0.0, %v1347
      %1349 = vmatmul.f32.gmra.mxu0 %v1223
      %v1350 = vpop.f32.mrf.mxu0
      %v1351 = vadd.f32 0.0, %v1350
      %1352 = vmatmul.f32.gmra.mxu0 %v1226
      %v1353 = vpop.f32.mrf.mxu0
      %v1354 = vadd.f32 0.0, %v1353
      %1355 = vmatmul.f32.gmra.mxu0 %v1229
      %v1356 = vpop.f32.mrf.mxu0
      %v1357 = vadd.f32 0.0, %v1356
      %1358 = vmatmul.f32.gmra.mxu0 %v1232
      %v1359 = vpop.f32.mrf.mxu0
      %v1360 = vadd.f32 0.0, %v1359
      %1361 = vmatmul.f32.gmra.mxu0 %v1235
      %v1362 = vpop.f32.mrf.mxu0
      %v1363 = vadd.f32 0.0, %v1362
      %1364 = vmatmul.f32.gmra.mxu0 %v1238
      %v1365 = vpop.f32.mrf.mxu0
      %v1366 = vadd.f32 0.0, %v1365
      %1367 = vmatmul.f32.gmra.mxu0 %v1241
      %v1368 = vpop.f32.mrf.mxu0
      %v1369 = vadd.f32 0.0, %v1368
      %1370 = vmatmul.f32.gmra.mxu0 %v1244
      %v1371 = vpop.f32.mrf.mxu0
      %v1372 = vadd.f32 0.0, %v1371
      %1373 = vmatmul.f32.gmra.mxu0 %v1247
      %v1374 = vpop.f32.mrf.mxu0
      %v1375 = vadd.f32 0.0, %v1374
      %1376 = vmatmul.f32.gmra.mxu0 %v1250
      %v1377 = vpop.f32.mrf.mxu0
      %v1378 = vadd.f32 0.0, %v1377
      %1379 = vmatmul.f32.gmra.mxu0 %v1253
      %v1380 = vpop.f32.mrf.mxu0
      %v1381 = vadd.f32 0.0, %v1380
      %1382 = vmatmul.f32.gmra.mxu0 %v1256
      %v1383 = vpop.f32.mrf.mxu0
      %v1384 = vadd.f32 0.0, %v1383
      %1385 = vmatmul.f32.gmra.mxu0 %v1259
      %v1386 = vpop.f32.mrf.mxu0
      %v1387 = vadd.f32 0.0, %v1386
      %1388 = vmatmul.f32.gmra.mxu0 %v1262
      %v1389 = vpop.f32.mrf.mxu0
      %v1390 = vadd.f32 0.0, %v1389
      %1391 = vmatmul.f32.gmra.mxu0 %v1265
      %v1392 = vpop.f32.mrf.mxu0
      %v1393 = vadd.f32 0.0, %v1392
      %1394 = vdwg.mxu0
      %v1395 = vadd.f32 %v1080, %v1285
      %v1396 = vadd.f32 %v1081, %v1288
      %v1397 = vadd.f32 %v1082, %v1291
      %v1398 = vadd.f32 %v1083, %v1294
      %v1399 = vadd.f32 %v1084, %v1297
      %v1400 = vadd.f32 %v1085, %v1300
      %v1401 = vadd.f32 %v1086, %v1303
      %v1402 = vadd.f32 %v1087, %v1306
      %v1403 = vadd.f32 %v1088, %v1309
      %v1404 = vadd.f32 %v1089, %v1312
      %v1405 = vadd.f32 %v1090, %v1315
      %v1406 = vadd.f32 %v1091, %v1318
      %v1407 = vadd.f32 %v1092, %v1321
      %v1408 = vadd.f32 %v1093, %v1324
      %v1409 = vadd.f32 %v1094, %v1327
      %v1410 = vadd.f32 %v1095, %v1330
      %v1411 = vadd.f32 %v1096, %v1333
      %v1412 = vadd.f32 %v1097, %v1336
      %v1413 = vadd.f32 %v1098, %v1339
      %v1414 = vadd.f32 %v1099, %v1342
      %v1415 = vadd.f32 %v1100, %v1345
      %v1416 = vadd.f32 %v1101, %v1348
      %v1417 = vadd.f32 %v1102, %v1351
      %v1418 = vadd.f32 %v1103, %v1354
      %v1419 = vadd.f32 %v1104, %v1357
      %v1420 = vadd.f32 %v1105, %v1360
      %v1421 = vadd.f32 %v1106, %v1363
      %v1422 = vadd.f32 %v1107, %v1366
      %v1423 = vadd.f32 %v1108, %v1369
      %v1424 = vadd.f32 %v1109, %v1372
      %v1425 = vadd.f32 %v1110, %v1375
      %v1426 = vadd.f32 %v1111, %v1378
      %v1427 = vadd.f32 %v1112, %v1381
      %v1428 = vadd.f32 %v1113, %v1384
      %v1429 = vadd.f32 %v1114, %v1387
      %v1430 = vadd.f32 %v1115, %v1390
      %v1431 = vadd.f32 %v1116, %v1393
      %v1432 = vld [vmem:[%s239] sm:$0xff]
      %v1433 = vld [vmem:[%s239 + $0x8] sm:$0xff]
      %v1434 = vld [vmem:[%s239 + $0x10] sm:$0xff]
      %v1435 = vld [vmem:[%s239 + $0x18] sm:$0xff]
      %v1436 = vld [vmem:[%s239 + $0x20] sm:$0xff]
      %v1437 = vld [vmem:[%s239 + $0x28] sm:$0xff]
      %v1438 = vld [vmem:[%s239 + $0x30] sm:$0xff]
      %v1439 = vld [vmem:[%s239 + $0x38] sm:$0xff]
      %v1440 = vld [vmem:[%s239 + $0x40] sm:$0xff]
      %v1441 = vld [vmem:[%s239 + $0x48] sm:$0xff]
      %v1442 = vld [vmem:[%s239 + $0x50] sm:$0xff]
      %v1443 = vld [vmem:[%s239 + $0x58] sm:$0xff]
      %v1444 = vld [vmem:[%s239 + $0x60] sm:$0xff]
      %v1445 = vld [vmem:[%s239 + $0x68] sm:$0xff]
      %v1446 = vld [vmem:[%s239 + $0x70] sm:$0xff]
      %v1447 = vld [vmem:[%s239 + $0x78] sm:$0xff]
      %v1448 = vld [vmem:[%s239 + $0x80] sm:$0xff]
      %v1449 = vld [vmem:[%s239 + $0x88] sm:$0xff]
      %v1450 = vld [vmem:[%s239 + $0x90] sm:$0xff]
      %v1451 = vld [vmem:[%s239 + $0x98] sm:$0xff]
      %v1452 = vld [vmem:[%s239 + $0xa0] sm:$0xff]
      %v1453 = vld [vmem:[%s239 + $0xa8] sm:$0xff]
      %v1454 = vld [vmem:[%s239 + $0xb0] sm:$0xff]
      %v1455 = vld [vmem:[%s239 + $0xb8] sm:$0xff]
      %v1456 = vld [vmem:[%s239 + $0xc0] sm:$0xff]
      %v1457 = vld [vmem:[%s239 + $0xc8] sm:$0xff]
      %v1458 = vld [vmem:[%s239 + $0xd0] sm:$0xff]
      %v1459 = vld [vmem:[%s239 + $0xd8] sm:$0xff]
      %v1460 = vld [vmem:[%s239 + $0xe0] sm:$0xff]
      %v1461 = vld [vmem:[%s239 + $0xe8] sm:$0xff]
      %v1462 = vld [vmem:[%s239 + $0xf0] sm:$0xff]
      %v1463 = vld [vmem:[%s239 + $0xf8] sm:$0xff]
      %v1464 = vld [vmem:[%s239 + $0x100] sm:$0xff]
      %v1465 = vld [vmem:[%s239 + $0x108] sm:$0xff]
      %v1466 = vld [vmem:[%s239 + $0x110] sm:$0xff]
      %v1467 = vld [vmem:[%s239 + $0x118] sm:$0xff]
      %v1468 = vld [vmem:[%s239 + $0x120] sm:$0x1]
      %v1469 = vld [vmem:[%s3] sm:$0xff]
      %v1470 = vld [vmem:[%s3 + $0x8] sm:$0xff]
      %v1471 = vld [vmem:[%s3 + $0x10] sm:$0xff]
      %vm1472 = vcmask 195584
      %v1474 = vsel %vm1472, %v1432, 0
      %v1477 = vsel %vm1472, %v1433, 0
      %v1480 = vsel %vm1472, %v1434, 0
      %v1483 = vsel %vm1472, %v1435, 0
      %v1486 = vsel %vm1472, %v1436, 0
      %v1489 = vsel %vm1472, %v1437, 0
      %v1492 = vsel %vm1472, %v1438, 0
      %v1495 = vsel %vm1472, %v1439, 0
      %v1498 = vsel %vm1472, %v1440, 0
      %v1501 = vsel %vm1472, %v1441, 0
      %v1504 = vsel %vm1472, %v1442, 0
      %v1507 = vsel %vm1472, %v1443, 0
      %v1510 = vsel %vm1472, %v1444, 0
      %v1513 = vsel %vm1472, %v1445, 0
      %v1516 = vsel %vm1472, %v1446, 0
      %v1519 = vsel %vm1472, %v1447, 0
      %v1522 = vsel %vm1472, %v1448, 0
      %v1525 = vsel %vm1472, %v1449, 0
      %v1528 = vsel %vm1472, %v1450, 0
      %v1531 = vsel %vm1472, %v1451, 0
      %v1534 = vsel %vm1472, %v1452, 0
      %v1537 = vsel %vm1472, %v1453, 0
      %v1540 = vsel %vm1472, %v1454, 0
      %v1543 = vsel %vm1472, %v1455, 0
      %v1546 = vsel %vm1472, %v1456, 0
      %v1549 = vsel %vm1472, %v1457, 0
      %v1552 = vsel %vm1472, %v1458, 0
      %v1555 = vsel %vm1472, %v1459, 0
      %v1558 = vsel %vm1472, %v1460, 0
      %v1561 = vsel %vm1472, %v1461, 0
      %v1564 = vsel %vm1472, %v1462, 0
      %v1567 = vsel %vm1472, %v1463, 0
      %v1570 = vsel %vm1472, %v1464, 0
      %v1573 = vsel %vm1472, %v1465, 0
      %v1576 = vsel %vm1472, %v1466, 0
      %v1579 = vsel %vm1472, %v1467, 0
      %v1582 = vsel %vm1472, %v1468, 0
      %1584 = vmatpush.msra.mxu0 0.0
      %1585 = vmatpush.msra.mxu0 0.0
      %1586 = vmatpush.msra.mxu0 0.0
      %1587 = vmatpush.msra.mxu0 0.0
      %1588 = vmatpush.msra.mxu0 0.0
      %1589 = vmatpush.msra.mxu0 0.0
      %1590 = vmatpush.msra.mxu0 0.0
      %1591 = vmatpush.msra.mxu0 0.0
      %1592 = vmatpush.msra.mxu0 0.0
      %1593 = vmatpush.msra.mxu0 0.0
      %1594 = vmatpush.msra.mxu0 0.0
      %1595 = vmatpush.msra.mxu0 0.0
      %1596 = vmatpush.msra.mxu0 0.0
      %1597 = vmatpush.msra.mxu0 %v1471
      %1598 = vmatpush.msra.mxu0 %v1470
      %1599 = vmatpush.msra.mxu0 %v1469
      %1600 = vmatmul.f32.gmra.mxu0 %v1474
      %v1601 = vpop.f32.mrf.mxu0
      %v1602 = vadd.f32 0.0, %v1601
      %1603 = vmatmul.f32.gmra.mxu0 %v1477
      %v1604 = vpop.f32.mrf.mxu0
      %v1605 = vadd.f32 0.0, %v1604
      %1606 = vmatmul.f32.gmra.mxu0 %v1480
      %v1607 = vpop.f32.mrf.mxu0
      %v1608 = vadd.f32 0.0, %v1607
      %1609 = vmatmul.f32.gmra.mxu0 %v1483
      %v1610 = vpop.f32.mrf.mxu0
      %v1611 = vadd.f32 0.0, %v1610
      %1612 = vmatmul.f32.gmra.mxu0 %v1486
      %v1613 = vpop.f32.mrf.mxu0
      %v1614 = vadd.f32 0.0, %v1613
      %1615 = vmatmul.f32.gmra.mxu0 %v1489
      %v1616 = vpop.f32.mrf.mxu0
      %v1617 = vadd.f32 0.0, %v1616
      %1618 = vmatmul.f32.gmra.mxu0 %v1492
      %v1619 = vpop.f32.mrf.mxu0
      %v1620 = vadd.f32 0.0, %v1619
      %1621 = vmatmul.f32.gmra.mxu0 %v1495
      %v1622 = vpop.f32.mrf.mxu0
      %v1623 = vadd.f32 0.0, %v1622
      %1624 = vmatmul.f32.gmra.mxu0 %v1498
      %v1625 = vpop.f32.mrf.mxu0
      %v1626 = vadd.f32 0.0, %v1625
      %1627 = vmatmul.f32.gmra.mxu0 %v1501
      %v1628 = vpop.f32.mrf.mxu0
      %v1629 = vadd.f32 0.0, %v1628
      %1630 = vmatmul.f32.gmra.mxu0 %v1504
      %v1631 = vpop.f32.mrf.mxu0
      %v1632 = vadd.f32 0.0, %v1631
      %1633 = vmatmul.f32.gmra.mxu0 %v1507
      %v1634 = vpop.f32.mrf.mxu0
      %v1635 = vadd.f32 0.0, %v1634
      %1636 = vmatmul.f32.gmra.mxu0 %v1510
      %v1637 = vpop.f32.mrf.mxu0
      %v1638 = vadd.f32 0.0, %v1637
      %1639 = vmatmul.f32.gmra.mxu0 %v1513
      %v1640 = vpop.f32.mrf.mxu0
      %v1641 = vadd.f32 0.0, %v1640
      %1642 = vmatmul.f32.gmra.mxu0 %v1516
      %v1643 = vpop.f32.mrf.mxu0
      %v1644 = vadd.f32 0.0, %v1643
      %1645 = vmatmul.f32.gmra.mxu0 %v1519
      %v1646 = vpop.f32.mrf.mxu0
      %v1647 = vadd.f32 0.0, %v1646
      %1648 = vmatmul.f32.gmra.mxu0 %v1522
      %v1649 = vpop.f32.mrf.mxu0
      %v1650 = vadd.f32 0.0, %v1649
      %1651 = vmatmul.f32.gmra.mxu0 %v1525
      %v1652 = vpop.f32.mrf.mxu0
      %v1653 = vadd.f32 0.0, %v1652
      %1654 = vmatmul.f32.gmra.mxu0 %v1528
      %v1655 = vpop.f32.mrf.mxu0
      %v1656 = vadd.f32 0.0, %v1655
      %1657 = vmatmul.f32.gmra.mxu0 %v1531
      %v1658 = vpop.f32.mrf.mxu0
      %v1659 = vadd.f32 0.0, %v1658
      %1660 = vmatmul.f32.gmra.mxu0 %v1534
      %v1661 = vpop.f32.mrf.mxu0
      %v1662 = vadd.f32 0.0, %v1661
      %1663 = vmatmul.f32.gmra.mxu0 %v1537
      %v1664 = vpop.f32.mrf.mxu0
      %v1665 = vadd.f32 0.0, %v1664
      %1666 = vmatmul.f32.gmra.mxu0 %v1540
      %v1667 = vpop.f32.mrf.mxu0
      %v1668 = vadd.f32 0.0, %v1667
      %1669 = vmatmul.f32.gmra.mxu0 %v1543
      %v1670 = vpop.f32.mrf.mxu0
      %v1671 = vadd.f32 0.0, %v1670
      %1672 = vmatmul.f32.gmra.mxu0 %v1546
      %v1673 = vpop.f32.mrf.mxu0
      %v1674 = vadd.f32 0.0, %v1673
      %1675 = vmatmul.f32.gmra.mxu0 %v1549
      %v1676 = vpop.f32.mrf.mxu0
      %v1677 = vadd.f32 0.0, %v1676
      %1678 = vmatmul.f32.gmra.mxu0 %v1552
      %v1679 = vpop.f32.mrf.mxu0
      %v1680 = vadd.f32 0.0, %v1679
      %1681 = vmatmul.f32.gmra.mxu0 %v1555
      %v1682 = vpop.f32.mrf.mxu0
      %v1683 = vadd.f32 0.0, %v1682
      %1684 = vmatmul.f32.gmra.mxu0 %v1558
      %v1685 = vpop.f32.mrf.mxu0
      %v1686 = vadd.f32 0.0, %v1685
      %1687 = vmatmul.f32.gmra.mxu0 %v1561
      %v1688 = vpop.f32.mrf.mxu0
      %v1689 = vadd.f32 0.0, %v1688
      %1690 = vmatmul.f32.gmra.mxu0 %v1564
      %v1691 = vpop.f32.mrf.mxu0
      %v1692 = vadd.f32 0.0, %v1691
      %1693 = vmatmul.f32.gmra.mxu0 %v1567
      %v1694 = vpop.f32.mrf.mxu0
      %v1695 = vadd.f32 0.0, %v1694
      %1696 = vmatmul.f32.gmra.mxu0 %v1570
      %v1697 = vpop.f32.mrf.mxu0
      %v1698 = vadd.f32 0.0, %v1697
      %1699 = vmatmul.f32.gmra.mxu0 %v1573
      %v1700 = vpop.f32.mrf.mxu0
      %v1701 = vadd.f32 0.0, %v1700
      %1702 = vmatmul.f32.gmra.mxu0 %v1576
      %v1703 = vpop.f32.mrf.mxu0
      %v1704 = vadd.f32 0.0, %v1703
      %1705 = vmatmul.f32.gmra.mxu0 %v1579
      %v1706 = vpop.f32.mrf.mxu0
      %v1707 = vadd.f32 0.0, %v1706
      %1708 = vmatmul.f32.gmra.mxu0 %v1582
      %v1709 = vpop.f32.mrf.mxu0
      %v1710 = vadd.f32 0.0, %v1709
      %1711 = vdwg.mxu0
      %v1712 = vadd.f32 %v1395, %v1602
      %v1713 = vadd.f32 %v1396, %v1605
      %v1714 = vadd.f32 %v1397, %v1608
      %v1715 = vadd.f32 %v1398, %v1611
      %v1716 = vadd.f32 %v1399, %v1614
      %v1717 = vadd.f32 %v1400, %v1617
      %v1718 = vadd.f32 %v1401, %v1620
      %v1719 = vadd.f32 %v1402, %v1623
      %v1720 = vadd.f32 %v1403, %v1626
      %v1721 = vadd.f32 %v1404, %v1629
      %v1722 = vadd.f32 %v1405, %v1632
      %v1723 = vadd.f32 %v1406, %v1635
      %v1724 = vadd.f32 %v1407, %v1638
      %v1725 = vadd.f32 %v1408, %v1641
      %v1726 = vadd.f32 %v1409, %v1644
      %v1727 = vadd.f32 %v1410, %v1647
      %v1728 = vadd.f32 %v1411, %v1650
      %v1729 = vadd.f32 %v1412, %v1653
      %v1730 = vadd.f32 %v1413, %v1656
      %v1731 = vadd.f32 %v1414, %v1659
      %v1732 = vadd.f32 %v1415, %v1662
      %v1733 = vadd.f32 %v1416, %v1665
      %v1734 = vadd.f32 %v1417, %v1668
      %v1735 = vadd.f32 %v1418, %v1671
      %v1736 = vadd.f32 %v1419, %v1674
      %v1737 = vadd.f32 %v1420, %v1677
      %v1738 = vadd.f32 %v1421, %v1680
      %v1739 = vadd.f32 %v1422, %v1683
      %v1740 = vadd.f32 %v1423, %v1686
      %v1741 = vadd.f32 %v1424, %v1689
      %v1742 = vadd.f32 %v1425, %v1692
      %v1743 = vadd.f32 %v1426, %v1695
      %v1744 = vadd.f32 %v1427, %v1698
      %v1745 = vadd.f32 %v1428, %v1701
      %v1746 = vadd.f32 %v1429, %v1704
      %v1747 = vadd.f32 %v1430, %v1707
      %v1748 = vadd.f32 %v1431, %v1710
      %v1749 = vld [vmem:[%s4] sm:$0x1]
      %v1751 = vperm.slane %v1749, 0
      %v1753 = vadd.f32 %v1712, %v1751
      %v1754 = vadd.f32 %v1713, %v1751
      %v1755 = vadd.f32 %v1714, %v1751
      %v1756 = vadd.f32 %v1715, %v1751
      %v1757 = vadd.f32 %v1716, %v1751
      %v1758 = vadd.f32 %v1717, %v1751
      %v1759 = vadd.f32 %v1718, %v1751
      %v1760 = vadd.f32 %v1719, %v1751
      %v1761 = vadd.f32 %v1720, %v1751
      %v1762 = vadd.f32 %v1721, %v1751
      %v1763 = vadd.f32 %v1722, %v1751
      %v1764 = vadd.f32 %v1723, %v1751
      %v1765 = vadd.f32 %v1724, %v1751
      %v1766 = vadd.f32 %v1725, %v1751
      %v1767 = vadd.f32 %v1726, %v1751
      %v1768 = vadd.f32 %v1727, %v1751
      %v1769 = vadd.f32 %v1728, %v1751
      %v1770 = vadd.f32 %v1729, %v1751
      %v1771 = vadd.f32 %v1730, %v1751
      %v1772 = vadd.f32 %v1731, %v1751
      %v1773 = vadd.f32 %v1732, %v1751
      %v1774 = vadd.f32 %v1733, %v1751
      %v1775 = vadd.f32 %v1734, %v1751
      %v1776 = vadd.f32 %v1735, %v1751
      %v1777 = vadd.f32 %v1736, %v1751
      %v1778 = vadd.f32 %v1737, %v1751
      %v1779 = vadd.f32 %v1738, %v1751
      %v1780 = vadd.f32 %v1739, %v1751
      %v1781 = vadd.f32 %v1740, %v1751
      %v1782 = vadd.f32 %v1741, %v1751
      %v1783 = vadd.f32 %v1742, %v1751
      %v1784 = vadd.f32 %v1743, %v1751
      %v1785 = vadd.f32 %v1744, %v1751
      %v1786 = vadd.f32 %v1745, %v1751
      %v1787 = vadd.f32 %v1746, %v1751
      %v1788 = vadd.f32 %v1747, %v1751
      %v1789 = vadd.f32 %v1748, %v1751
      %vm1790 = vcmask 261120
      %1791 = vst.msk [vmem:[%s244] sm:$0xff] %vm1790, %v1753
      %1792 = vst.msk [vmem:[%s244 + $0x8] sm:$0xff] %vm1790, %v1754
      %1793 = vst.msk [vmem:[%s244 + $0x10] sm:$0xff] %vm1790, %v1755
      %1794 = vst.msk [vmem:[%s244 + $0x18] sm:$0xff] %vm1790, %v1756
      %1795 = vst.msk [vmem:[%s244 + $0x20] sm:$0xff] %vm1790, %v1757
      %1796 = vst.msk [vmem:[%s244 + $0x28] sm:$0xff] %vm1790, %v1758
      %1797 = vst.msk [vmem:[%s244 + $0x30] sm:$0xff] %vm1790, %v1759
      %1798 = vst.msk [vmem:[%s244 + $0x38] sm:$0xff] %vm1790, %v1760
      %1799 = vst.msk [vmem:[%s244 + $0x40] sm:$0xff] %vm1790, %v1761
      %1800 = vst.msk [vmem:[%s244 + $0x48] sm:$0xff] %vm1790, %v1762
      %1801 = vst.msk [vmem:[%s244 + $0x50] sm:$0xff] %vm1790, %v1763
      %1802 = vst.msk [vmem:[%s244 + $0x58] sm:$0xff] %vm1790, %v1764
      %1803 = vst.msk [vmem:[%s244 + $0x60] sm:$0xff] %vm1790, %v1765
      %1804 = vst.msk [vmem:[%s244 + $0x68] sm:$0xff] %vm1790, %v1766
      %1805 = vst.msk [vmem:[%s244 + $0x70] sm:$0xff] %vm1790, %v1767
      %1806 = vst.msk [vmem:[%s244 + $0x78] sm:$0xff] %vm1790, %v1768
      %1807 = vst.msk [vmem:[%s244 + $0x80] sm:$0xff] %vm1790, %v1769
      %1808 = vst.msk [vmem:[%s244 + $0x88] sm:$0xff] %vm1790, %v1770
      %1809 = vst.msk [vmem:[%s244 + $0x90] sm:$0xff] %vm1790, %v1771
      %1810 = vst.msk [vmem:[%s244 + $0x98] sm:$0xff] %vm1790, %v1772
      %1811 = vst.msk [vmem:[%s244 + $0xa0] sm:$0xff] %vm1790, %v1773
      %1812 = vst.msk [vmem:[%s244 + $0xa8] sm:$0xff] %vm1790, %v1774
      %1813 = vst.msk [vmem:[%s244 + $0xb0] sm:$0xff] %vm1790, %v1775
      %1814 = vst.msk [vmem:[%s244 + $0xb8] sm:$0xff] %vm1790, %v1776
      %1815 = vst.msk [vmem:[%s244 + $0xc0] sm:$0xff] %vm1790, %v1777
      %1816 = vst.msk [vmem:[%s244 + $0xc8] sm:$0xff] %vm1790, %v1778
      %1817 = vst.msk [vmem:[%s244 + $0xd0] sm:$0xff] %vm1790, %v1779
      %1818 = vst.msk [vmem:[%s244 + $0xd8] sm:$0xff] %vm1790, %v1780
      %1819 = vst.msk [vmem:[%s244 + $0xe0] sm:$0xff] %vm1790, %v1781
      %1820 = vst.msk [vmem:[%s244 + $0xe8] sm:$0xff] %vm1790, %v1782
      %1821 = vst.msk [vmem:[%s244 + $0xf0] sm:$0xff] %vm1790, %v1783
      %1822 = vst.msk [vmem:[%s244 + $0xf8] sm:$0xff] %vm1790, %v1784
      %1823 = vst.msk [vmem:[%s244 + $0x100] sm:$0xff] %vm1790, %v1785
      %1824 = vst.msk [vmem:[%s244 + $0x108] sm:$0xff] %vm1790, %v1786
      %1825 = vst.msk [vmem:[%s244 + $0x110] sm:$0xff] %vm1790, %v1787
      %1826 = vst.msk [vmem:[%s244 + $0x118] sm:$0xff] %vm1790, %v1788
      %vm1827 = vcmask 253952
      %1828 = vst.msk [vmem:[%s244 + $0x120] sm:$0x1] %vm1827, %v1789
      %p1829 = scmp.lt.s32.totalorder %s16, 1
      %s1830 = scalar_select %p1829, %s16, 1
      %s1831 = smul.addr %s1830, 37
      %s1832 = smul.addr %s1831, 8
      %s1833 = scalar_lea.vmem %s5, %s1832
      // Predicated region
      $region41: #{_lambda_.3} parent=39 // pred_check
        %p1834 = pneg %p149
      $region42: #{_lambda_.3} parent=39 // pred_check_branch
        %1836 = sbr.rel (%p1834) target = $region44
      $region43: #{_lambda_.3} parent=39 // pred_region
        _
      $region44: #{_lambda_.3} parent=39 // pred_fallthru
        _
    $region40: #{_lambda_.3} parent=5 // pred_fallthru
      _
    %p1837 = scmp.le.s32.totalorder 2, %s11
    // Predicated region
    $region45: #{_lambda_.3} parent=5 // pred_check
      %p1838 = pneg %p1837
    $region46: #{_lambda_.3} parent=5 // pred_check_branch
      %1840 = sbr.rel (%p1838) target = $region48
    $region47: #{_lambda_.3} parent=5 // pred_region
      %s1841 = ssub.s32 %s11, 2
      // Predicated region
      $region49: #{_lambda_.3} parent=47 // pred_check
        %p1842 = pneg %p155
      $region50: #{_lambda_.3} parent=47 // pred_check_branch
        %1844 = sbr.rel (%p1842) target = $region52
      $region51: #{_lambda_.3} parent=47 // pred_region
        %p1845 = scmp.lt.s32.totalorder %s17, 1
        %s1846 = scalar_select %p1845, %s17, 1
        %s1847 = smul.addr %s1846, 37
        %s1848 = smul.addr %s1847, 8
        %s1849 = scalar_lea.vmem %s5, %s1848
      $region52: #{_lambda_.3} parent=47 // pred_fallthru
        _
    $region48: #{_lambda_.3} parent=5 // pred_fallthru
      _
  $region6: #{_lambda_.3} parent=0 // loop_footer
    %s15 = sadd.s32 1, %s11
  $region7: #{_lambda_.3} parent=0 // loop_footer_branch
    %10 = sbr.rel target = $region3
  $region8: #{_lambda_.3} parent=0 // loop_exit
    _

</llo_original>
